<compile_context>
chip_gen: v7x
topology: tpu7x:2x2x1
jax: 0.10.0
libtpu: 0.0.40
codegen_flags: <defaults>
</compile_context>

<pallas_src>
import functools

import jax
import jax.numpy as jnp
from jax.experimental import pallas as pl
from jax.experimental.pallas import tpu as pltpu

_SUBLANE = 8          # f32 sublane height
_SMALL_BATCH = 64     # single-block fast-path threshold (RL action selection)


def _round_up(n, m):
    return ((n + m - 1) // m) * m


def _qnetwork_kernel(x_ref, w1_ref, b1_ref, w2_ref, b2_ref, w3_ref, b3_ref,
                     out_ref):
    prec = jax.lax.Precision.HIGHEST   # fp32 parity with torch nn.Linear
    # Layer 1: Linear + ReLU
    h1 = jnp.dot(x_ref[...], w1_ref[...],
                 preferred_element_type=jnp.float32, precision=prec)
    h1 = jnp.maximum(h1 + b1_ref[...], 0.0)
    # Layer 2: Linear + ReLU
    h2 = jnp.dot(h1, w2_ref[...],
                 preferred_element_type=jnp.float32, precision=prec)
    h2 = jnp.maximum(h2 + b2_ref[...], 0.0)
    # Layer 3: Linear
    y = jnp.dot(h2, w3_ref[...],
                preferred_element_type=jnp.float32, precision=prec)
    out_ref[...] = (y + b3_ref[...]).astype(out_ref.dtype)


@functools.partial(jax.jit, static_argnames=("max_batch_tile",))
def qnetwork_forward(x, params, *, max_batch_tile=2048):
    """x: [B, input_size] float32. params: dict with w1,b1,w2,b2,w3,b3."""
    w1, b1 = params["w1"], params["b1"]
    w2, b2 = params["w2"], params["b2"]
    w3, b3 = params["w3"], params["b3"]

    B = x.shape[0]
    in_size, hid_size = w1.shape
    out_size = w3.shape[1]

    b_r = _round_up(B, _SUBLANE)
    if b_r <= _SMALL_BATCH:
        # Tiny-batch fast path: one grid step, minimal wrapper ops.
        tb = b_r
    else:
        # Guarantee >= 2 blocks so v7x's two TensorCores can split the
        # "parallel" batch axis; cap the tile so huge batches still pipeline.
        tb = min(max_batch_tile, _round_up(pl.cdiv(b_r, 2), _SUBLANE))
    b_p = _round_up(b_r, tb)
    n_blocks = b_p // tb

    # Pad batch rows only when needed (features are never padded).
    x_in = x if b_p == B else jnp.pad(x, ((0, b_p - B), (0, 0)))

    def resident(shape):
        # Constant index_map -> DMA'd once, stays resident in VMEM.
        return pl.BlockSpec(shape, lambda i: (0, 0))

    flops = 2 * b_p * (in_size * hid_size + hid_size * hid_size
                       + hid_size * out_size)
    bytes_accessed = 4 * (b_p * in_size + b_p * out_size
                          + w1.size + b1.size + w2.size + b2.size
                          + w3.size + b3.size)

    out = pl.pallas_call(
        _qnetwork_kernel,
        out_shape=jax.ShapeDtypeStruct((b_p, out_size), jnp.float32),
        grid=(n_blocks,),
        in_specs=[
            pl.BlockSpec((tb, in_size), lambda i: (i, 0)),        # x streams
            resident((in_size, hid_size)), resident((1, hid_size)),   # layer 1
            resident((hid_size, hid_size)), resident((1, hid_size)),  # layer 2
            resident((hid_size, out_size)), resident((1, out_size)),  # layer 3
        ],
        out_specs=pl.BlockSpec((tb, out_size), lambda i: (i, 0)),
        compiler_params=pltpu.CompilerParams(
            dimension_semantics=("parallel",)),
        cost_estimate=pl.CostEstimate(
            flops=flops, transcendentals=0, bytes_accessed=bytes_accessed),
    )(x_in, w1, b1, w2, b2, w3, b3)

    # Only batch rows were padded; slice them back out if necessary.
    return out if b_p == B else out[:B]


def init_params(key, input_size, hidden_size, output_size):
    """Deterministic init. Weights stored as [in, out] (transposed vs torch)."""
    ks = jax.random.split(key, 6)

    def linear_init(kw, kb, fan_in, fan_out):
        # Mimic PyTorch nn.Linear default: U(-1/sqrt(fan_in), 1/sqrt(fan_in)).
        bound = 1.0 / jnp.sqrt(jnp.float32(fan_in))
        w = jax.random.uniform(kw, (fan_in, fan_out), jnp.float32,
                               minval=-bound, maxval=bound)
        b = jax.random.uniform(kb, (1, fan_out), jnp.float32,
                               minval=-bound, maxval=bound)
        return w, b

    w1, b1 = linear_init(ks[0], ks[1], input_size, hidden_size)
    w2, b2 = linear_init(ks[2], ks[3], hidden_size, hidden_size)
    w3, b3 = linear_init(ks[4], ks[5], hidden_size, output_size)
    return {"w1": w1, "b1": b1, "w2": w2, "b2": b2, "w3": w3, "b3": b3}


def reference_forward(x, params):
    prec = jax.lax.Precision.HIGHEST
    h1 = jnp.maximum(
        jnp.dot(x, params["w1"], precision=prec) + params["b1"], 0.0)
    h2 = jnp.maximum(
        jnp.dot(h1, params["w2"], precision=prec) + params["b2"], 0.0)
    return jnp.dot(h2, params["w3"], precision=prec) + params["b3"]


if __name__ == "__main__":
    key = jax.random.PRNGKey(0)
    k_x, k_p = jax.random.split(key)

    batch = 8
    input_size = 16   # small state vector
    hidden_size = 32
    output_size = 4   # number of actions

    params = init_params(k_p, input_size, hidden_size, output_size)

    # Small-batch fast path (grid=(1,), no pad/slice ops).
    x = jax.random.normal(k_x, (batch, input_size), dtype=jnp.float32)
    out = jax.block_until_ready(qnetwork_forward(x, params))
    ref = jax.block_until_ready(reference_forward(x, params))
    assert out.shape == (batch, output_size)
    assert jnp.allclose(out, ref, atol=1e-4, rtol=1e-4)

    # Large ragged batch: exercises batch tiling (>= 2 blocks) + row pad/slice.
    big_b = 1000
    xb = jax.random.normal(k_x, (big_b, input_size), dtype=jnp.float32)
    out_b = jax.block_until_ready(qnetwork_forward(xb, params))
    ref_b = jax.block_until_ready(reference_forward(xb, params))
    assert out_b.shape == (big_b, output_size)
    assert jnp.allclose(out_b, ref_b, atol=1e-4, rtol=1e-4)

    print("KERNEL_OK")
</pallas_src>

<mosaic_0001>
module attributes {stable_mosaic.version = 11 : i64} {
  func.func @_qnetwork_kernel(%arg0: i32, %arg1: memref<8x16xf32, #tpu.memory_space<vmem>>, %arg2: memref<16x32xf32, #tpu.memory_space<vmem>>, %arg3: memref<1x32xf32, #tpu.memory_space<vmem>>, %arg4: memref<32x32xf32, #tpu.memory_space<vmem>>, %arg5: memref<1x32xf32, #tpu.memory_space<vmem>>, %arg6: memref<32x4xf32, #tpu.memory_space<vmem>>, %arg7: memref<1x4xf32, #tpu.memory_space<vmem>>, %arg8: memref<8x4xf32, #tpu.memory_space<vmem>>) attributes {dimension_semantics = [#tpu.dimension_semantics<parallel>], iteration_bounds = array<i64: 1>, scalar_prefetch = 0 : i64, scratch_operands = 0 : i64, tpu.core_type = #tpu.core_type<tc>, window_params = [{transform_indices = @transform_0, window_bounds = array<i64: 8, 16>}, {pipeline_mode = #tpu.pipeline_mode<synchronous>, transform_indices = @transform_1, window_bounds = array<i64: 16, 32>}, {pipeline_mode = #tpu.pipeline_mode<synchronous>, transform_indices = @transform_2, window_bounds = array<i64: 1, 32>}, {pipeline_mode = #tpu.pipeline_mode<synchronous>, transform_indices = @transform_3, window_bounds = array<i64: 32, 32>}, {pipeline_mode = #tpu.pipeline_mode<synchronous>, transform_indices = @transform_4, window_bounds = array<i64: 1, 32>}, {pipeline_mode = #tpu.pipeline_mode<synchronous>, transform_indices = @transform_5, window_bounds = array<i64: 32, 4>}, {pipeline_mode = #tpu.pipeline_mode<synchronous>, transform_indices = @transform_6, window_bounds = array<i64: 1, 4>}, {transform_indices = @transform_7, window_bounds = array<i64: 8, 4>}]} {
    %c0 = arith.constant 0 : index
    %c0_0 = arith.constant 0 : index
    %0 = vector.load %arg1[%c0, %c0_0] : memref<8x16xf32, #tpu.memory_space<vmem>>, vector<8x16xf32>
    %c0_1 = arith.constant 0 : index
    %c0_2 = arith.constant 0 : index
    %1 = vector.load %arg2[%c0_1, %c0_2] : memref<16x32xf32, #tpu.memory_space<vmem>>, vector<16x32xf32>
    %cst = arith.constant dense<0.000000e+00> : vector<8x32xf32>
    %2 = tpu.matmul %0, %1, %cst {dimension_numbers = #tpu.dot_dimension_numbers<[1], [0], [0], [1], [0, 0, 1, 1], [], []>, precision = #tpu.contract_precision<fp32>} : vector<8x16xf32>, vector<16x32xf32>, vector<8x32xf32> -> vector<8x32xf32>
    %c0_3 = arith.constant 0 : index
    %c0_4 = arith.constant 0 : index
    %3 = vector.load %arg3[%c0_3, %c0_4] : memref<1x32xf32, #tpu.memory_space<vmem>>, vector<1x32xf32>
    %4 = vector.broadcast %3 : vector<1x32xf32> to vector<8x32xf32>
    %5 = arith.addf %2, %4 : vector<8x32xf32>
    %cst_5 = arith.constant 0.000000e+00 : f32
    %6 = vector.broadcast %cst_5 : f32 to vector<8x32xf32>
    %7 = arith.maximumf %5, %6 : vector<8x32xf32>
    %c0_6 = arith.constant 0 : index
    %c0_7 = arith.constant 0 : index
    %8 = vector.load %arg4[%c0_6, %c0_7] : memref<32x32xf32, #tpu.memory_space<vmem>>, vector<32x32xf32>
    %cst_8 = arith.constant dense<0.000000e+00> : vector<8x32xf32>
    %9 = tpu.matmul %7, %8, %cst_8 {dimension_numbers = #tpu.dot_dimension_numbers<[1], [0], [0], [1], [0, 0, 1, 1], [], []>, precision = #tpu.contract_precision<fp32>} : vector<8x32xf32>, vector<32x32xf32>, vector<8x32xf32> -> vector<8x32xf32>
    %c0_9 = arith.constant 0 : index
    %c0_10 = arith.constant 0 : index
    %10 = vector.load %arg5[%c0_9, %c0_10] : memref<1x32xf32, #tpu.memory_space<vmem>>, vector<1x32xf32>
    %11 = vector.broadcast %10 : vector<1x32xf32> to vector<8x32xf32>
    %12 = arith.addf %9, %11 : vector<8x32xf32>
    %cst_11 = arith.constant 0.000000e+00 : f32
    %13 = vector.broadcast %cst_11 : f32 to vector<8x32xf32>
    %14 = arith.maximumf %12, %13 : vector<8x32xf32>
    %c0_12 = arith.constant 0 : index
    %c0_13 = arith.constant 0 : index
    %15 = vector.load %arg6[%c0_12, %c0_13] : memref<32x4xf32, #tpu.memory_space<vmem>>, vector<32x4xf32>
    %cst_14 = arith.constant dense<0.000000e+00> : vector<8x4xf32>
    %16 = tpu.matmul %14, %15, %cst_14 {dimension_numbers = #tpu.dot_dimension_numbers<[1], [0], [0], [1], [0, 0, 1, 1], [], []>, precision = #tpu.contract_precision<fp32>} : vector<8x32xf32>, vector<32x4xf32>, vector<8x4xf32> -> vector<8x4xf32>
    %c0_15 = arith.constant 0 : index
    %c0_16 = arith.constant 0 : index
    %17 = vector.load %arg7[%c0_15, %c0_16] : memref<1x4xf32, #tpu.memory_space<vmem>>, vector<1x4xf32>
    %18 = vector.broadcast %17 : vector<1x4xf32> to vector<8x4xf32>
    %19 = arith.addf %16, %18 : vector<8x4xf32>
    %c0_17 = arith.constant 0 : index
    %c0_18 = arith.constant 0 : index
    %20 = vector.load %arg8[%c0_17, %c0_18] : memref<8x4xf32, #tpu.memory_space<vmem>>, vector<8x4xf32>
    tpu.vector_store %arg8[%c0_17, %c0_18], %19 {strides = array<i32>} : memref<8x4xf32, #tpu.memory_space<vmem>>, vector<8x4xf32>,
    return
  }
  func.func @transform_0(%arg0: i32) -> (i32, i32) {
    %c0_i32 = arith.constant 0 : i32
    %c0_i32_0 = arith.constant 0 : i32
    return %arg0, %c0_i32 : i32, i32
  }
  func.func @transform_1(%arg0: i32) -> (i32, i32) {
    %c0_i32 = arith.constant 0 : i32
    %c0_i32_0 = arith.constant 0 : i32
    %c0_i32_1 = arith.constant 0 : i32
    return %c0_i32, %c0_i32_0 : i32, i32
  }
  func.func @transform_2(%arg0: i32) -> (i32, i32) {
    %c0_i32 = arith.constant 0 : i32
    %c0_i32_0 = arith.constant 0 : i32
    %c0_i32_1 = arith.constant 0 : i32
    return %c0_i32, %c0_i32_0 : i32, i32
  }
  func.func @transform_3(%arg0: i32) -> (i32, i32) {
    %c0_i32 = arith.constant 0 : i32
    %c0_i32_0 = arith.constant 0 : i32
    %c0_i32_1 = arith.constant 0 : i32
    return %c0_i32, %c0_i32_0 : i32, i32
  }
  func.func @transform_4(%arg0: i32) -> (i32, i32) {
    %c0_i32 = arith.constant 0 : i32
    %c0_i32_0 = arith.constant 0 : i32
    %c0_i32_1 = arith.constant 0 : i32
    return %c0_i32, %c0_i32_0 : i32, i32
  }
  func.func @transform_5(%arg0: i32) -> (i32, i32) {
    %c0_i32 = arith.constant 0 : i32
    %c0_i32_0 = arith.constant 0 : i32
    %c0_i32_1 = arith.constant 0 : i32
    return %c0_i32, %c0_i32_0 : i32, i32
  }
  func.func @transform_6(%arg0: i32) -> (i32, i32) {
    %c0_i32 = arith.constant 0 : i32
    %c0_i32_0 = arith.constant 0 : i32
    %c0_i32_1 = arith.constant 0 : i32
    return %c0_i32, %c0_i32_0 : i32, i32
  }
  func.func @transform_7(%arg0: i32) -> (i32, i32) {
    %c0_i32 = arith.constant 0 : i32
    %c0_i32_0 = arith.constant 0 : i32
    return %arg0, %c0_i32 : i32, i32
  }
}

</mosaic_0001>

<llo_original>
// kernel: qnetwork_forward.1
$region0: #{qnetwork_forward.1}
  #allocation0 [shape = 'u32[]', space=smem, size = 0x4, offset = 0x4, fixed_abs, tag = 'smem constant byte address 0x4 - core index']
  #allocation1 [shape = 'u32[144,128]{1,0:T(1,128)}', space=vmem, size = 0x12000, scoped, tag = 'internal scratch']
  %s0 = inlined_call_operand.hbm [shape: f32[8,16], index: 0, kind: input, shape index: {}]
  %s1 = inlined_call_operand.vmem [shape: f32[16,32], index: 1, kind: input, shape index: {}]
  %s2 = inlined_call_operand.vmem [shape: f32[1,32], index: 2, kind: input, shape index: {}]
  %s3 = inlined_call_operand.vmem [shape: f32[32,32], index: 3, kind: input, shape index: {}]
  %s4 = inlined_call_operand.vmem [shape: f32[1,32], index: 4, kind: input, shape index: {}]
  %s5 = inlined_call_operand.vmem [shape: f32[32,4], index: 5, kind: input, shape index: {}]
  %s6 = inlined_call_operand.vmem [shape: f32[1,4], index: 6, kind: input, shape index: {}]
  %s7 = inlined_call_operand.vmem [shape: f32[8,4], index: 7, kind: output, shape index: {}]
  %s8 = sld [smem:[#allocation0]]
  $region42: #{qnetwork_forward.1} parent=0
    _
  %s10 = ssub.s32 1, %s8
  %s11 = scalar_select 0, %s10, %s8
  $region1: #{qnetwork_forward.1} parent=0
    #allocation2 [shape = 'u8[4096]{0}', space=vmem, size = 0x1000, scoped, tag = 'input window, operand 0, single buffered']
    #allocation3 [shape = 's32[1]{0}', space=sflag, size = 0x4, scoped, tag = 'scoped memory for qnetwork_forward.1']
    %12 = vsyncpa [#allocation3], 0
    // Predicated region
    $region2: #{qnetwork_forward.1} parent=1 // pred_check
      _
    $region3: #{qnetwork_forward.1} parent=1 // pred_check_branch
      %14 = sbr.rel (0) target = $region5
    $region4: #{qnetwork_forward.1} parent=1 // pred_region
      %s16 = ssub.s32 128, 128
      %17 = vsyncadd [#allocation3], %s16
      %s19 = sshll.u32 [#allocation2], 4
      %s20 = int_to_ptr.vmem [resolvable:$true] %s19
      %22 = dma.hbm_to_vmem [thread:$0]  %s0, 128, %s20, [#allocation3]
    $region5: #{qnetwork_forward.1} parent=1 // pred_fallthru
      _
    // Predicated region
    $region6: #{qnetwork_forward.1} parent=1 // pred_check
      _
    $region7: #{qnetwork_forward.1} parent=1 // pred_check_branch
      %24 = sbr.rel (0) target = $region9
    $region8: #{qnetwork_forward.1} parent=1 // pred_region
      _
    $region9: #{qnetwork_forward.1} parent=1 // pred_fallthru
      _
    // Predicated region
    $region10: #{qnetwork_forward.1} parent=1 // pred_check
      _
    $region11: #{qnetwork_forward.1} parent=1 // pred_check_branch
      %26 = sbr.rel (0) target = $region13
    $region12: #{qnetwork_forward.1} parent=1 // pred_region
      _
    $region13: #{qnetwork_forward.1} parent=1 // pred_fallthru
      _
    // Predicated region
    $region14: #{qnetwork_forward.1} parent=1 // pred_check
      _
    $region15: #{qnetwork_forward.1} parent=1 // pred_check_branch
      %28 = sbr.rel (0) target = $region17
    $region16: #{qnetwork_forward.1} parent=1 // pred_region
      _
    $region17: #{qnetwork_forward.1} parent=1 // pred_fallthru
      _
    // Predicated region
    $region18: #{qnetwork_forward.1} parent=1 // pred_check
      _
    $region19: #{qnetwork_forward.1} parent=1 // pred_check_branch
      %30 = sbr.rel (0) target = $region21
    $region20: #{qnetwork_forward.1} parent=1 // pred_region
      _
    $region21: #{qnetwork_forward.1} parent=1 // pred_fallthru
      _
    // Predicated region
    $region22: #{qnetwork_forward.1} parent=1 // pred_check
      _
    $region23: #{qnetwork_forward.1} parent=1 // pred_check_branch
      %32 = sbr.rel (0) target = $region25
    $region24: #{qnetwork_forward.1} parent=1 // pred_region
      _
    $region25: #{qnetwork_forward.1} parent=1 // pred_fallthru
      _
    // Predicated region
    $region26: #{qnetwork_forward.1} parent=1 // pred_check
      _
    $region27: #{qnetwork_forward.1} parent=1 // pred_check_branch
      %34 = sbr.rel (0) target = $region29
    $region28: #{qnetwork_forward.1} parent=1 // pred_region
      _
    $region29: #{qnetwork_forward.1} parent=1 // pred_fallthru
      _
    // Predicated region
    $region30: #{qnetwork_forward.1} parent=1 // pred_check
      _
    $region31: #{qnetwork_forward.1} parent=1 // pred_check_branch
      %36 = sbr.rel (0) target = $region33
    $region32: #{qnetwork_forward.1} parent=1 // pred_region
      %37 = dma.done [#allocation3], 128
    $region33: #{qnetwork_forward.1} parent=1 // pred_fallthru
      _
    %v38 = vld [vmem:[#allocation2] sm:$0xff]
    %v39 = vld [vmem:[%s1] sm:$0xff]
    %v40 = vld [vmem:[%s1 + $0x8] sm:$0xff]
    %v41 = vld [vmem:[%s2] sm:$0x1]
    %v43 = vlaneseq
    %v44 = vshrl.u32 %v43, 7
    %v45 = vsub.s32 0, %v44
    %v46 = vrot.slane %v41, %v45
    %vm48 = vcmask 130048
    %v50 = vsel %vm48, %v38, 0
    %52 = vmatprep.subr.mxu0 0.0
    %v53 = vand.u32 %v39, 4294901760
    %54 = vmatpush1.msra.mxu0 %v53
    %55 = vmatprep.subr.mxu0 0.0
    %v56 = vand.u32 %v40, 4294901760
    %57 = vmatpush1.msra.mxu0 %v56
    %58 = vmatprep.subr.mxu0 0.0
    %59 = vmatpush1.msra.mxu0 0.0
    %60 = vmatprep.subr.mxu0 0.0
    %61 = vmatpush1.msra.mxu0 0.0
    %62 = vmatprep.subr.mxu0 0.0
    %63 = vmatpush1.msra.mxu0 0.0
    %64 = vmatprep.subr.mxu0 0.0
    %65 = vmatpush1.msra.mxu0 0.0
    %66 = vmatprep.subr.mxu0 0.0
    %67 = vmatpush1.msra.mxu0 0.0
    %68 = vmatprep.subr.mxu0 0.0
    %69 = vmatpush1.msra.mxu0 0.0
    %70 = vmatprep.subr.mxu0 0.0
    %71 = vmatpush1.msra.mxu0 0.0
    %72 = vmatprep.subr.mxu0 0.0
    %73 = vmatpush1.msra.mxu0 0.0
    %74 = vmatprep.subr.mxu0 0.0
    %75 = vmatpush1.msra.mxu0 0.0
    %76 = vmatprep.subr.mxu0 0.0
    %77 = vmatpush1.msra.mxu0 0.0
    %78 = vmatprep.subr.mxu0 0.0
    %79 = vmatpush1.msra.mxu0 0.0
    %80 = vmatprep.subr.mxu0 0.0
    %81 = vmatpush1.msra.mxu0 0.0
    %82 = vmatprep.subr.mxu0 0.0
    %83 = vmatpush1.msra.mxu0 0.0
    %84 = vmatprep.subr.mxu0 0.0
    %85 = vmatpush1.msra.mxu0 0.0
    %86 = vmatprep.subr.mxu0 0.0
    %87 = vmatpush1.msra.mxu0 0.0
    %88 = vmatprep.subr.mxu0 0.0
    %89 = vmatpush1.msra.mxu0 0.0
    %90 = vmatprep.subr.mxu0 0.0
    %91 = vmatpush1.msra.mxu0 0.0
    %92 = vmatprep.subr.mxu0 0.0
    %93 = vmatpush1.msra.mxu0 0.0
    %94 = vmatprep.subr.mxu0 0.0
    %95 = vmatpush1.msra.mxu0 0.0
    %96 = vmatprep.subr.mxu0 0.0
    %97 = vmatpush1.msra.mxu0 0.0
    %98 = vmatprep.subr.mxu0 0.0
    %99 = vmatpush1.msra.mxu0 0.0
    %100 = vmatprep.subr.mxu0 0.0
    %101 = vmatpush1.msra.mxu0 0.0
    %102 = vmatprep.subr.mxu0 0.0
    %103 = vmatpush1.msra.mxu0 0.0
    %104 = vmatprep.subr.mxu0 0.0
    %105 = vmatpush1.msra.mxu0 0.0
    %106 = vmatprep.subr.mxu0 0.0
    %107 = vmatpush1.msra.mxu0 0.0
    %108 = vmatprep.subr.mxu0 0.0
    %109 = vmatpush1.msra.mxu0 0.0
    %110 = vmatprep.subr.mxu0 0.0
    %111 = vmatpush1.msra.mxu0 0.0
    %112 = vmatprep.subr.mxu0 0.0
    %113 = vmatpush1.msra.mxu0 0.0
    %114 = vmatprep.subr.mxu0 0.0
    %115 = vmatpush1.msra.mxu0 0.0
    %116 = vmatprep.subr.mxu0 0.0
    %117 = vmatpush1.msra.mxu0 0.0
    %118 = vmatprep.mubr.f32.mxu0 0.0
    %v119 = vand.u32 %v50, 4294901760
    %v120 = vsub.f32 %v50, %v119
    %v121 = vand.u32 %v120, 4294901760
    %v122 = vsub.f32 %v120, %v121
    %v123 = vand.u32 %v122, 4294901760
    %124 = vmatmul.mubr.f32.gmra.mrb[0].mxu0 %v123
    %v125 = vpop.f32.mrb[0].mxu0
    %v126 = vadd.f32 %v46, %v125
    %v127 = vpop.f32.mrb[0].mxu0
    %128 = vdwg.mxu0
    %129 = vmatprep.subr.mxu0 0.0
    %v130 = vand.u32 %v39, 4294901760
    %v131 = vsub.f32 %v39, %v130
    %v132 = vand.u32 %v131, 4294901760
    %v133 = vsub.f32 %v131, %v132
    %v134 = vand.u32 %v133, 4294901760
    %135 = vmatpush1.msra.mxu0 %v134
    %136 = vmatprep.subr.mxu0 0.0
    %v137 = vand.u32 %v40, 4294901760
    %v138 = vsub.f32 %v40, %v137
    %v139 = vand.u32 %v138, 4294901760
    %v140 = vsub.f32 %v138, %v139
    %v141 = vand.u32 %v140, 4294901760
    %142 = vmatpush1.msra.mxu0 %v141
    %143 = vmatprep.subr.mxu0 0.0
    %144 = vmatpush1.msra.mxu0 0.0
    %145 = vmatprep.subr.mxu0 0.0
    %146 = vmatpush1.msra.mxu0 0.0
    %147 = vmatprep.subr.mxu0 0.0
    %148 = vmatpush1.msra.mxu0 0.0
    %149 = vmatprep.subr.mxu0 0.0
    %150 = vmatpush1.msra.mxu0 0.0
    %151 = vmatprep.subr.mxu0 0.0
    %152 = vmatpush1.msra.mxu0 0.0
    %153 = vmatprep.subr.mxu0 0.0
    %154 = vmatpush1.msra.mxu0 0.0
    %155 = vmatprep.subr.mxu0 0.0
    %156 = vmatpush1.msra.mxu0 0.0
    %157 = vmatprep.subr.mxu0 0.0
    %158 = vmatpush1.msra.mxu0 0.0
    %159 = vmatprep.subr.mxu0 0.0
    %160 = vmatpush1.msra.mxu0 0.0
    %161 = vmatprep.subr.mxu0 0.0
    %162 = vmatpush1.msra.mxu0 0.0
    %163 = vmatprep.subr.mxu0 0.0
    %164 = vmatpush1.msra.mxu0 0.0
    %165 = vmatprep.subr.mxu0 0.0
    %166 = vmatpush1.msra.mxu0 0.0
    %167 = vmatprep.subr.mxu0 0.0
    %168 = vmatpush1.msra.mxu0 0.0
    %169 = vmatprep.subr.mxu0 0.0
    %170 = vmatpush1.msra.mxu0 0.0
    %171 = vmatprep.subr.mxu0 0.0
    %172 = vmatpush1.msra.mxu0 0.0
    %173 = vmatprep.subr.mxu0 0.0
    %174 = vmatpush1.msra.mxu0 0.0
    %175 = vmatprep.subr.mxu0 0.0
    %176 = vmatpush1.msra.mxu0 0.0
    %177 = vmatprep.subr.mxu0 0.0
    %178 = vmatpush1.msra.mxu0 0.0
    %179 = vmatprep.subr.mxu0 0.0
    %180 = vmatpush1.msra.mxu0 0.0
    %181 = vmatprep.subr.mxu0 0.0
    %182 = vmatpush1.msra.mxu0 0.0
    %183 = vmatprep.subr.mxu0 0.0
    %184 = vmatpush1.msra.mxu0 0.0
    %185 = vmatprep.subr.mxu0 0.0
    %186 = vmatpush1.msra.mxu0 0.0
    %187 = vmatprep.subr.mxu0 0.0
    %188 = vmatpush1.msra.mxu0 0.0
    %189 = vmatprep.subr.mxu0 0.0
    %190 = vmatpush1.msra.mxu0 0.0
    %191 = vmatprep.subr.mxu0 0.0
    %192 = vmatpush1.msra.mxu0 0.0
    %193 = vmatprep.subr.mxu0 0.0
    %194 = vmatpush1.msra.mxu0 0.0
    %195 = vmatprep.subr.mxu0 0.0
    %196 = vmatpush1.msra.mxu0 0.0
    %197 = vmatprep.subr.mxu0 0.0
    %198 = vmatpush1.msra.mxu0 0.0
    %199 = vmatprep.subr.mxu0 0.0
    %200 = vmatpush1.msra.mxu0 0.0
    %201 = vmatprep.subr.mxu0 0.0
    %202 = vmatpush1.msra.mxu0 0.0
    %203 = vmatprep.mubr.f32.mxu0 0.0
    %v204 = vand.u32 %v50, 4294901760
    %205 = vmatmul.mubr.f32.gmra.mrb[0].mxu0 %v204
    %v206 = vpop.f32.mrb[0].mxu0
    %v207 = vadd.f32 %v126, %v206
    %v208 = vpop.f32.mrb[0].mxu0
    %209 = vdwg.mxu0
    %210 = vmatprep.subr.mxu0 0.0
    %v211 = vand.u32 %v39, 4294901760
    %v212 = vsub.f32 %v39, %v211
    %213 = vmatpush1.msra.mxu0 %v212
    %214 = vmatprep.subr.mxu0 0.0
    %v215 = vand.u32 %v40, 4294901760
    %v216 = vsub.f32 %v40, %v215
    %217 = vmatpush1.msra.mxu0 %v216
    %218 = vmatprep.subr.mxu0 0.0
    %219 = vmatpush1.msra.mxu0 0.0
    %220 = vmatprep.subr.mxu0 0.0
    %221 = vmatpush1.msra.mxu0 0.0
    %222 = vmatprep.subr.mxu0 0.0
    %223 = vmatpush1.msra.mxu0 0.0
    %224 = vmatprep.subr.mxu0 0.0
    %225 = vmatpush1.msra.mxu0 0.0
    %226 = vmatprep.subr.mxu0 0.0
    %227 = vmatpush1.msra.mxu0 0.0
    %228 = vmatprep.subr.mxu0 0.0
    %229 = vmatpush1.msra.mxu0 0.0
    %230 = vmatprep.subr.mxu0 0.0
    %231 = vmatpush1.msra.mxu0 0.0
    %232 = vmatprep.subr.mxu0 0.0
    %233 = vmatpush1.msra.mxu0 0.0
    %234 = vmatprep.subr.mxu0 0.0
    %235 = vmatpush1.msra.mxu0 0.0
    %236 = vmatprep.subr.mxu0 0.0
    %237 = vmatpush1.msra.mxu0 0.0
    %238 = vmatprep.subr.mxu0 0.0
    %239 = vmatpush1.msra.mxu0 0.0
    %240 = vmatprep.subr.mxu0 0.0
    %241 = vmatpush1.msra.mxu0 0.0
    %242 = vmatprep.subr.mxu0 0.0
    %243 = vmatpush1.msra.mxu0 0.0
    %244 = vmatprep.subr.mxu0 0.0
    %245 = vmatpush1.msra.mxu0 0.0
    %246 = vmatprep.subr.mxu0 0.0
    %247 = vmatpush1.msra.mxu0 0.0
    %248 = vmatprep.subr.mxu0 0.0
    %249 = vmatpush1.msra.mxu0 0.0
    %250 = vmatprep.subr.mxu0 0.0
    %251 = vmatpush1.msra.mxu0 0.0
    %252 = vmatprep.subr.mxu0 0.0
    %253 = vmatpush1.msra.mxu0 0.0
    %254 = vmatprep.subr.mxu0 0.0
    %255 = vmatpush1.msra.mxu0 0.0
    %256 = vmatprep.subr.mxu0 0.0
    %257 = vmatpush1.msra.mxu0 0.0
    %258 = vmatprep.subr.mxu0 0.0
    %259 = vmatpush1.msra.mxu0 0.0
    %260 = vmatprep.subr.mxu0 0.0
    %261 = vmatpush1.msra.mxu0 0.0
    %262 = vmatprep.subr.mxu0 0.0
    %263 = vmatpush1.msra.mxu0 0.0
    %264 = vmatprep.subr.mxu0 0.0
    %265 = vmatpush1.msra.mxu0 0.0
    %266 = vmatprep.subr.mxu0 0.0
    %267 = vmatpush1.msra.mxu0 0.0
    %268 = vmatprep.subr.mxu0 0.0
    %269 = vmatpush1.msra.mxu0 0.0
    %270 = vmatprep.subr.mxu0 0.0
    %271 = vmatpush1.msra.mxu0 0.0
    %272 = vmatprep.subr.mxu0 0.0
    %273 = vmatpush1.msra.mxu0 0.0
    %274 = vmatprep.subr.mxu0 0.0
    %275 = vmatpush1.msra.mxu0 0.0
    %276 = vmatprep.subr.mxu0 0.0
    %277 = vmatpush1.msra.mxu0 0.0
    %278 = vmatprep.mubr.f32.mxu0 0.0
    %v279 = vand.u32 %v50, 4294901760
    %v280 = vsub.f32 %v50, %v279
    %281 = vmatmul.mubr.f32.gmra.mrb[0].mxu0 %v280
    %v282 = vpop.f32.mrb[0].mxu0
    %v283 = vadd.f32 %v207, %v282
    %v284 = vpop.f32.mrb[0].mxu0
    %285 = vdwg.mxu0
    %286 = vmatprep.subr.mxu0 0.0
    %v287 = vand.u32 %v39, 4294901760
    %288 = vmatpush1.msra.mxu0 %v287
    %289 = vmatprep.subr.mxu0 0.0
    %v290 = vand.u32 %v40, 4294901760
    %291 = vmatpush1.msra.mxu0 %v290
    %292 = vmatprep.subr.mxu0 0.0
    %293 = vmatpush1.msra.mxu0 0.0
    %294 = vmatprep.subr.mxu0 0.0
    %295 = vmatpush1.msra.mxu0 0.0
    %296 = vmatprep.subr.mxu0 0.0
    %297 = vmatpush1.msra.mxu0 0.0
    %298 = vmatprep.subr.mxu0 0.0
    %299 = vmatpush1.msra.mxu0 0.0
    %300 = vmatprep.subr.mxu0 0.0
    %301 = vmatpush1.msra.mxu0 0.0
    %302 = vmatprep.subr.mxu0 0.0
    %303 = vmatpush1.msra.mxu0 0.0
    %304 = vmatprep.subr.mxu0 0.0
    %305 = vmatpush1.msra.mxu0 0.0
    %306 = vmatprep.subr.mxu0 0.0
    %307 = vmatpush1.msra.mxu0 0.0
    %308 = vmatprep.subr.mxu0 0.0
    %309 = vmatpush1.msra.mxu0 0.0
    %310 = vmatprep.subr.mxu0 0.0
    %311 = vmatpush1.msra.mxu0 0.0
    %312 = vmatprep.subr.mxu0 0.0
    %313 = vmatpush1.msra.mxu0 0.0
    %314 = vmatprep.subr.mxu0 0.0
    %315 = vmatpush1.msra.mxu0 0.0
    %316 = vmatprep.subr.mxu0 0.0
    %317 = vmatpush1.msra.mxu0 0.0
    %318 = vmatprep.subr.mxu0 0.0
    %319 = vmatpush1.msra.mxu0 0.0
    %320 = vmatprep.subr.mxu0 0.0
    %321 = vmatpush1.msra.mxu0 0.0
    %322 = vmatprep.subr.mxu0 0.0
    %323 = vmatpush1.msra.mxu0 0.0
    %324 = vmatprep.subr.mxu0 0.0
    %325 = vmatpush1.msra.mxu0 0.0
    %326 = vmatprep.subr.mxu0 0.0
    %327 = vmatpush1.msra.mxu0 0.0
    %328 = vmatprep.subr.mxu0 0.0
    %329 = vmatpush1.msra.mxu0 0.0
    %330 = vmatprep.subr.mxu0 0.0
    %331 = vmatpush1.msra.mxu0 0.0
    %332 = vmatprep.subr.mxu0 0.0
    %333 = vmatpush1.msra.mxu0 0.0
    %334 = vmatprep.subr.mxu0 0.0
    %335 = vmatpush1.msra.mxu0 0.0
    %336 = vmatprep.subr.mxu0 0.0
    %337 = vmatpush1.msra.mxu0 0.0
    %338 = vmatprep.subr.mxu0 0.0
    %339 = vmatpush1.msra.mxu0 0.0
    %340 = vmatprep.subr.mxu0 0.0
    %341 = vmatpush1.msra.mxu0 0.0
    %342 = vmatprep.subr.mxu0 0.0
    %343 = vmatpush1.msra.mxu0 0.0
    %344 = vmatprep.subr.mxu0 0.0
    %345 = vmatpush1.msra.mxu0 0.0
    %346 = vmatprep.subr.mxu0 0.0
    %347 = vmatpush1.msra.mxu0 0.0
    %348 = vmatprep.subr.mxu0 0.0
    %349 = vmatpush1.msra.mxu0 0.0
    %350 = vmatprep.subr.mxu0 0.0
    %351 = vmatpush1.msra.mxu0 0.0
    %352 = vmatprep.mubr.f32.mxu0 0.0
    %v353 = vand.u32 %v50, 4294901760
    %v354 = vsub.f32 %v50, %v353
    %v355 = vand.u32 %v354, 4294901760
    %356 = vmatmul.mubr.f32.gmra.mrb[0].mxu0 %v355
    %v357 = vpop.f32.mrb[0].mxu0
    %v358 = vadd.f32 %v283, %v357
    %v359 = vpop.f32.mrb[0].mxu0
    %360 = vdwg.mxu0
    %361 = vmatprep.subr.mxu0 0.0
    %v362 = vand.u32 %v39, 4294901760
    %v363 = vsub.f32 %v39, %v362
    %v364 = vand.u32 %v363, 4294901760
    %365 = vmatpush1.msra.mxu0 %v364
    %366 = vmatprep.subr.mxu0 0.0
    %v367 = vand.u32 %v40, 4294901760
    %v368 = vsub.f32 %v40, %v367
    %v369 = vand.u32 %v368, 4294901760
    %370 = vmatpush1.msra.mxu0 %v369
    %371 = vmatprep.subr.mxu0 0.0
    %372 = vmatpush1.msra.mxu0 0.0
    %373 = vmatprep.subr.mxu0 0.0
    %374 = vmatpush1.msra.mxu0 0.0
    %375 = vmatprep.subr.mxu0 0.0
    %376 = vmatpush1.msra.mxu0 0.0
    %377 = vmatprep.subr.mxu0 0.0
    %378 = vmatpush1.msra.mxu0 0.0
    %379 = vmatprep.subr.mxu0 0.0
    %380 = vmatpush1.msra.mxu0 0.0
    %381 = vmatprep.subr.mxu0 0.0
    %382 = vmatpush1.msra.mxu0 0.0
    %383 = vmatprep.subr.mxu0 0.0
    %384 = vmatpush1.msra.mxu0 0.0
    %385 = vmatprep.subr.mxu0 0.0
    %386 = vmatpush1.msra.mxu0 0.0
    %387 = vmatprep.subr.mxu0 0.0
    %388 = vmatpush1.msra.mxu0 0.0
    %389 = vmatprep.subr.mxu0 0.0
    %390 = vmatpush1.msra.mxu0 0.0
    %391 = vmatprep.subr.mxu0 0.0
    %392 = vmatpush1.msra.mxu0 0.0
    %393 = vmatprep.subr.mxu0 0.0
    %394 = vmatpush1.msra.mxu0 0.0
    %395 = vmatprep.subr.mxu0 0.0
    %396 = vmatpush1.msra.mxu0 0.0
    %397 = vmatprep.subr.mxu0 0.0
    %398 = vmatpush1.msra.mxu0 0.0
    %399 = vmatprep.subr.mxu0 0.0
    %400 = vmatpush1.msra.mxu0 0.0
    %401 = vmatprep.subr.mxu0 0.0
    %402 = vmatpush1.msra.mxu0 0.0
    %403 = vmatprep.subr.mxu0 0.0
    %404 = vmatpush1.msra.mxu0 0.0
    %405 = vmatprep.subr.mxu0 0.0
    %406 = vmatpush1.msra.mxu0 0.0
    %407 = vmatprep.subr.mxu0 0.0
    %408 = vmatpush1.msra.mxu0 0.0
    %409 = vmatprep.subr.mxu0 0.0
    %410 = vmatpush1.msra.mxu0 0.0
    %411 = vmatprep.subr.mxu0 0.0
    %412 = vmatpush1.msra.mxu0 0.0
    %413 = vmatprep.subr.mxu0 0.0
    %414 = vmatpush1.msra.mxu0 0.0
    %415 = vmatprep.subr.mxu0 0.0
    %416 = vmatpush1.msra.mxu0 0.0
    %417 = vmatprep.subr.mxu0 0.0
    %418 = vmatpush1.msra.mxu0 0.0
    %419 = vmatprep.subr.mxu0 0.0
    %420 = vmatpush1.msra.mxu0 0.0
    %421 = vmatprep.subr.mxu0 0.0
    %422 = vmatpush1.msra.mxu0 0.0
    %423 = vmatprep.subr.mxu0 0.0
    %424 = vmatpush1.msra.mxu0 0.0
    %425 = vmatprep.subr.mxu0 0.0
    %426 = vmatpush1.msra.mxu0 0.0
    %427 = vmatprep.subr.mxu0 0.0
    %428 = vmatpush1.msra.mxu0 0.0
    %429 = vmatprep.subr.mxu0 0.0
    %430 = vmatpush1.msra.mxu0 0.0
    %431 = vmatprep.mubr.f32.mxu0 0.0
    %v432 = vand.u32 %v50, 4294901760
    %433 = vmatmul.mubr.f32.gmra.mrb[0].mxu0 %v432
    %v434 = vpop.f32.mrb[0].mxu0
    %v435 = vadd.f32 %v358, %v434
    %v436 = vpop.f32.mrb[0].mxu0
    %437 = vdwg.mxu0
    %438 = vmatprep.subr.mxu0 0.0
    %v439 = vand.u32 %v39, 4294901760
    %440 = vmatpush1.msra.mxu0 %v439
    %441 = vmatprep.subr.mxu0 0.0
    %v442 = vand.u32 %v40, 4294901760
    %443 = vmatpush1.msra.mxu0 %v442
    %444 = vmatprep.subr.mxu0 0.0
    %445 = vmatpush1.msra.mxu0 0.0
    %446 = vmatprep.subr.mxu0 0.0
    %447 = vmatpush1.msra.mxu0 0.0
    %448 = vmatprep.subr.mxu0 0.0
    %449 = vmatpush1.msra.mxu0 0.0
    %450 = vmatprep.subr.mxu0 0.0
    %451 = vmatpush1.msra.mxu0 0.0
    %452 = vmatprep.subr.mxu0 0.0
    %453 = vmatpush1.msra.mxu0 0.0
    %454 = vmatprep.subr.mxu0 0.0
    %455 = vmatpush1.msra.mxu0 0.0
    %456 = vmatprep.subr.mxu0 0.0
    %457 = vmatpush1.msra.mxu0 0.0
    %458 = vmatprep.subr.mxu0 0.0
    %459 = vmatpush1.msra.mxu0 0.0
    %460 = vmatprep.subr.mxu0 0.0
    %461 = vmatpush1.msra.mxu0 0.0
    %462 = vmatprep.subr.mxu0 0.0
    %463 = vmatpush1.msra.mxu0 0.0
    %464 = vmatprep.subr.mxu0 0.0
    %465 = vmatpush1.msra.mxu0 0.0
    %466 = vmatprep.subr.mxu0 0.0
    %467 = vmatpush1.msra.mxu0 0.0
    %468 = vmatprep.subr.mxu0 0.0
    %469 = vmatpush1.msra.mxu0 0.0
    %470 = vmatprep.subr.mxu0 0.0
    %471 = vmatpush1.msra.mxu0 0.0
    %472 = vmatprep.subr.mxu0 0.0
    %473 = vmatpush1.msra.mxu0 0.0
    %474 = vmatprep.subr.mxu0 0.0
    %475 = vmatpush1.msra.mxu0 0.0
    %476 = vmatprep.subr.mxu0 0.0
    %477 = vmatpush1.msra.mxu0 0.0
    %478 = vmatprep.subr.mxu0 0.0
    %479 = vmatpush1.msra.mxu0 0.0
    %480 = vmatprep.subr.mxu0 0.0
    %481 = vmatpush1.msra.mxu0 0.0
    %482 = vmatprep.subr.mxu0 0.0
    %483 = vmatpush1.msra.mxu0 0.0
    %484 = vmatprep.subr.mxu0 0.0
    %485 = vmatpush1.msra.mxu0 0.0
    %486 = vmatprep.subr.mxu0 0.0
    %487 = vmatpush1.msra.mxu0 0.0
    %488 = vmatprep.subr.mxu0 0.0
    %489 = vmatpush1.msra.mxu0 0.0
    %490 = vmatprep.subr.mxu0 0.0
    %491 = vmatpush1.msra.mxu0 0.0
    %492 = vmatprep.subr.mxu0 0.0
    %493 = vmatpush1.msra.mxu0 0.0
    %494 = vmatprep.subr.mxu0 0.0
    %495 = vmatpush1.msra.mxu0 0.0
    %496 = vmatprep.subr.mxu0 0.0
    %497 = vmatpush1.msra.mxu0 0.0
    %498 = vmatprep.subr.mxu0 0.0
    %499 = vmatpush1.msra.mxu0 0.0
    %500 = vmatprep.subr.mxu0 0.0
    %501 = vmatpush1.msra.mxu0 0.0
    %502 = vmatprep.subr.mxu0 0.0
    %503 = vmatpush1.msra.mxu0 0.0
    %504 = vmatprep.mubr.f32.mxu0 0.0
    %v505 = vand.u32 %v50, 4294901760
    %506 = vmatmul.mubr.f32.gmra.mrb[0].mxu0 %v505
    %v507 = vpop.f32.mrb[0].mxu0
    %v508 = vadd.f32 %v435, %v507
    %v509 = vpop.f32.mrb[0].mxu0
    %510 = vdwg.mxu0
    %v511 = vmax.f32 %v508, 0.0
    %v512 = vld [vmem:[%s3] sm:$0xff]
    %v513 = vld [vmem:[%s3 + $0x8] sm:$0xff]
    %v514 = vld [vmem:[%s3 + $0x10] sm:$0xff]
    %v515 = vld [vmem:[%s3 + $0x18] sm:$0xff]
    %v516 = vld [vmem:[%s4] sm:$0x1]
    %v518 = vlaneseq
    %v519 = vshrl.u32 %v518, 7
    %v520 = vsub.s32 0, %v519
    %v521 = vrot.slane %v516, %v520
    %vm523 = vcmask 261120
    %v525 = vsel %vm523, %v511, 0
    %527 = vmatprep.subr.mxu0 0.0
    %v528 = vand.u32 %v512, 4294901760
    %529 = vmatpush1.msra.mxu0 %v528
    %530 = vmatprep.subr.mxu0 0.0
    %v531 = vand.u32 %v513, 4294901760
    %532 = vmatpush1.msra.mxu0 %v531
    %533 = vmatprep.subr.mxu0 0.0
    %v534 = vand.u32 %v514, 4294901760
    %535 = vmatpush1.msra.mxu0 %v534
    %536 = vmatprep.subr.mxu0 0.0
    %v537 = vand.u32 %v515, 4294901760
    %538 = vmatpush1.msra.mxu0 %v537
    %539 = vmatprep.subr.mxu0 0.0
    %540 = vmatpush1.msra.mxu0 0.0
    %541 = vmatprep.subr.mxu0 0.0
    %542 = vmatpush1.msra.mxu0 0.0
    %543 = vmatprep.subr.mxu0 0.0
    %544 = vmatpush1.msra.mxu0 0.0
    %545 = vmatprep.subr.mxu0 0.0
    %546 = vmatpush1.msra.mxu0 0.0
    %547 = vmatprep.subr.mxu0 0.0
    %548 = vmatpush1.msra.mxu0 0.0
    %549 = vmatprep.subr.mxu0 0.0
    %550 = vmatpush1.msra.mxu0 0.0
    %551 = vmatprep.subr.mxu0 0.0
    %552 = vmatpush1.msra.mxu0 0.0
    %553 = vmatprep.subr.mxu0 0.0
    %554 = vmatpush1.msra.mxu0 0.0
    %555 = vmatprep.subr.mxu0 0.0
    %556 = vmatpush1.msra.mxu0 0.0
    %557 = vmatprep.subr.mxu0 0.0
    %558 = vmatpush1.msra.mxu0 0.0
    %559 = vmatprep.subr.mxu0 0.0
    %560 = vmatpush1.msra.mxu0 0.0
    %561 = vmatprep.subr.mxu0 0.0
    %562 = vmatpush1.msra.mxu0 0.0
    %563 = vmatprep.subr.mxu0 0.0
    %564 = vmatpush1.msra.mxu0 0.0
    %565 = vmatprep.subr.mxu0 0.0
    %566 = vmatpush1.msra.mxu0 0.0
    %567 = vmatprep.subr.mxu0 0.0
    %568 = vmatpush1.msra.mxu0 0.0
    %569 = vmatprep.subr.mxu0 0.0
    %570 = vmatpush1.msra.mxu0 0.0
    %571 = vmatprep.subr.mxu0 0.0
    %572 = vmatpush1.msra.mxu0 0.0
    %573 = vmatprep.subr.mxu0 0.0
    %574 = vmatpush1.msra.mxu0 0.0
    %575 = vmatprep.subr.mxu0 0.0
    %576 = vmatpush1.msra.mxu0 0.0
    %577 = vmatprep.subr.mxu0 0.0
    %578 = vmatpush1.msra.mxu0 0.0
    %579 = vmatprep.subr.mxu0 0.0
    %580 = vmatpush1.msra.mxu0 0.0
    %581 = vmatprep.subr.mxu0 0.0
    %582 = vmatpush1.msra.mxu0 0.0
    %583 = vmatprep.subr.mxu0 0.0
    %584 = vmatpush1.msra.mxu0 0.0
    %585 = vmatprep.subr.mxu0 0.0
    %586 = vmatpush1.msra.mxu0 0.0
    %587 = vmatprep.subr.mxu0 0.0
    %588 = vmatpush1.msra.mxu0 0.0
    %589 = vmatprep.subr.mxu0 0.0
    %590 = vmatpush1.msra.mxu0 0.0
    %591 = vmatprep.subr.mxu0 0.0
    %592 = vmatpush1.msra.mxu0 0.0
    %593 = vmatprep.subr.mxu0 0.0
    %594 = vmatpush1.msra.mxu0 0.0
    %595 = vmatprep.mubr.f32.mxu0 0.0
    %v596 = vand.u32 %v525, 4294901760
    %v597 = vsub.f32 %v525, %v596
    %v598 = vand.u32 %v597, 4294901760
    %v599 = vsub.f32 %v597, %v598
    %v600 = vand.u32 %v599, 4294901760
    %601 = vmatmul.mubr.f32.gmra.mrb[0].mxu0 %v600
    %v602 = vpop.f32.mrb[0].mxu0
    %v603 = vadd.f32 %v521, %v602
    %v604 = vpop.f32.mrb[0].mxu0
    %605 = vdwg.mxu0
    %606 = vmatprep.subr.mxu0 0.0
    %v607 = vand.u32 %v512, 4294901760
    %v608 = vsub.f32 %v512, %v607
    %v609 = vand.u32 %v608, 4294901760
    %v610 = vsub.f32 %v608, %v609
    %v611 = vand.u32 %v610, 4294901760
    %612 = vmatpush1.msra.mxu0 %v611
    %613 = vmatprep.subr.mxu0 0.0
    %v614 = vand.u32 %v513, 4294901760
    %v615 = vsub.f32 %v513, %v614
    %v616 = vand.u32 %v615, 4294901760
    %v617 = vsub.f32 %v615, %v616
    %v618 = vand.u32 %v617, 4294901760
    %619 = vmatpush1.msra.mxu0 %v618
    %620 = vmatprep.subr.mxu0 0.0
    %v621 = vand.u32 %v514, 4294901760
    %v622 = vsub.f32 %v514, %v621
    %v623 = vand.u32 %v622, 4294901760
    %v624 = vsub.f32 %v622, %v623
    %v625 = vand.u32 %v624, 4294901760
    %626 = vmatpush1.msra.mxu0 %v625
    %627 = vmatprep.subr.mxu0 0.0
    %v628 = vand.u32 %v515, 4294901760
    %v629 = vsub.f32 %v515, %v628
    %v630 = vand.u32 %v629, 4294901760
    %v631 = vsub.f32 %v629, %v630
    %v632 = vand.u32 %v631, 4294901760
    %633 = vmatpush1.msra.mxu0 %v632
    %634 = vmatprep.subr.mxu0 0.0
    %635 = vmatpush1.msra.mxu0 0.0
    %636 = vmatprep.subr.mxu0 0.0
    %637 = vmatpush1.msra.mxu0 0.0
    %638 = vmatprep.subr.mxu0 0.0
    %639 = vmatpush1.msra.mxu0 0.0
    %640 = vmatprep.subr.mxu0 0.0
    %641 = vmatpush1.msra.mxu0 0.0
    %642 = vmatprep.subr.mxu0 0.0
    %643 = vmatpush1.msra.mxu0 0.0
    %644 = vmatprep.subr.mxu0 0.0
    %645 = vmatpush1.msra.mxu0 0.0
    %646 = vmatprep.subr.mxu0 0.0
    %647 = vmatpush1.msra.mxu0 0.0
    %648 = vmatprep.subr.mxu0 0.0
    %649 = vmatpush1.msra.mxu0 0.0
    %650 = vmatprep.subr.mxu0 0.0
    %651 = vmatpush1.msra.mxu0 0.0
    %652 = vmatprep.subr.mxu0 0.0
    %653 = vmatpush1.msra.mxu0 0.0
    %654 = vmatprep.subr.mxu0 0.0
    %655 = vmatpush1.msra.mxu0 0.0
    %656 = vmatprep.subr.mxu0 0.0
    %657 = vmatpush1.msra.mxu0 0.0
    %658 = vmatprep.subr.mxu0 0.0
    %659 = vmatpush1.msra.mxu0 0.0
    %660 = vmatprep.subr.mxu0 0.0
    %661 = vmatpush1.msra.mxu0 0.0
    %662 = vmatprep.subr.mxu0 0.0
    %663 = vmatpush1.msra.mxu0 0.0
    %664 = vmatprep.subr.mxu0 0.0
    %665 = vmatpush1.msra.mxu0 0.0
    %666 = vmatprep.subr.mxu0 0.0
    %667 = vmatpush1.msra.mxu0 0.0
    %668 = vmatprep.subr.mxu0 0.0
    %669 = vmatpush1.msra.mxu0 0.0
    %670 = vmatprep.subr.mxu0 0.0
    %671 = vmatpush1.msra.mxu0 0.0
    %672 = vmatprep.subr.mxu0 0.0
    %673 = vmatpush1.msra.mxu0 0.0
    %674 = vmatprep.subr.mxu0 0.0
    %675 = vmatpush1.msra.mxu0 0.0
    %676 = vmatprep.subr.mxu0 0.0
    %677 = vmatpush1.msra.mxu0 0.0
    %678 = vmatprep.subr.mxu0 0.0
    %679 = vmatpush1.msra.mxu0 0.0
    %680 = vmatprep.subr.mxu0 0.0
    %681 = vmatpush1.msra.mxu0 0.0
    %682 = vmatprep.subr.mxu0 0.0
    %683 = vmatpush1.msra.mxu0 0.0
    %684 = vmatprep.subr.mxu0 0.0
    %685 = vmatpush1.msra.mxu0 0.0
    %686 = vmatprep.subr.mxu0 0.0
    %687 = vmatpush1.msra.mxu0 0.0
    %688 = vmatprep.subr.mxu0 0.0
    %689 = vmatpush1.msra.mxu0 0.0
    %690 = vmatprep.mubr.f32.mxu0 0.0
    %v691 = vand.u32 %v525, 4294901760
    %692 = vmatmul.mubr.f32.gmra.mrb[0].mxu0 %v691
    %v693 = vpop.f32.mrb[0].mxu0
    %v694 = vadd.f32 %v603, %v693
    %v695 = vpop.f32.mrb[0].mxu0
    %696 = vdwg.mxu0
    %697 = vmatprep.subr.mxu0 0.0
    %v698 = vand.u32 %v512, 4294901760
    %v699 = vsub.f32 %v512, %v698
    %700 = vmatpush1.msra.mxu0 %v699
    %701 = vmatprep.subr.mxu0 0.0
    %v702 = vand.u32 %v513, 4294901760
    %v703 = vsub.f32 %v513, %v702
    %704 = vmatpush1.msra.mxu0 %v703
    %705 = vmatprep.subr.mxu0 0.0
    %v706 = vand.u32 %v514, 4294901760
    %v707 = vsub.f32 %v514, %v706
    %708 = vmatpush1.msra.mxu0 %v707
    %709 = vmatprep.subr.mxu0 0.0
    %v710 = vand.u32 %v515, 4294901760
    %v711 = vsub.f32 %v515, %v710
    %712 = vmatpush1.msra.mxu0 %v711
    %713 = vmatprep.subr.mxu0 0.0
    %714 = vmatpush1.msra.mxu0 0.0
    %715 = vmatprep.subr.mxu0 0.0
    %716 = vmatpush1.msra.mxu0 0.0
    %717 = vmatprep.subr.mxu0 0.0
    %718 = vmatpush1.msra.mxu0 0.0
    %719 = vmatprep.subr.mxu0 0.0
    %720 = vmatpush1.msra.mxu0 0.0
    %721 = vmatprep.subr.mxu0 0.0
    %722 = vmatpush1.msra.mxu0 0.0
    %723 = vmatprep.subr.mxu0 0.0
    %724 = vmatpush1.msra.mxu0 0.0
    %725 = vmatprep.subr.mxu0 0.0
    %726 = vmatpush1.msra.mxu0 0.0
    %727 = vmatprep.subr.mxu0 0.0
    %728 = vmatpush1.msra.mxu0 0.0
    %729 = vmatprep.subr.mxu0 0.0
    %730 = vmatpush1.msra.mxu0 0.0
    %731 = vmatprep.subr.mxu0 0.0
    %732 = vmatpush1.msra.mxu0 0.0
    %733 = vmatprep.subr.mxu0 0.0
    %734 = vmatpush1.msra.mxu0 0.0
    %735 = vmatprep.subr.mxu0 0.0
    %736 = vmatpush1.msra.mxu0 0.0
    %737 = vmatprep.subr.mxu0 0.0
    %738 = vmatpush1.msra.mxu0 0.0
    %739 = vmatprep.subr.mxu0 0.0
    %740 = vmatpush1.msra.mxu0 0.0
    %741 = vmatprep.subr.mxu0 0.0
    %742 = vmatpush1.msra.mxu0 0.0
    %743 = vmatprep.subr.mxu0 0.0
    %744 = vmatpush1.msra.mxu0 0.0
    %745 = vmatprep.subr.mxu0 0.0
    %746 = vmatpush1.msra.mxu0 0.0
    %747 = vmatprep.subr.mxu0 0.0
    %748 = vmatpush1.msra.mxu0 0.0
    %749 = vmatprep.subr.mxu0 0.0
    %750 = vmatpush1.msra.mxu0 0.0
    %751 = vmatprep.subr.mxu0 0.0
    %752 = vmatpush1.msra.mxu0 0.0
    %753 = vmatprep.subr.mxu0 0.0
    %754 = vmatpush1.msra.mxu0 0.0
    %755 = vmatprep.subr.mxu0 0.0
    %756 = vmatpush1.msra.mxu0 0.0
    %757 = vmatprep.subr.mxu0 0.0
    %758 = vmatpush1.msra.mxu0 0.0
    %759 = vmatprep.subr.mxu0 0.0
    %760 = vmatpush1.msra.mxu0 0.0
    %761 = vmatprep.subr.mxu0 0.0
    %762 = vmatpush1.msra.mxu0 0.0
    %763 = vmatprep.subr.mxu0 0.0
    %764 = vmatpush1.msra.mxu0 0.0
    %765 = vmatprep.subr.mxu0 0.0
    %766 = vmatpush1.msra.mxu0 0.0
    %767 = vmatprep.subr.mxu0 0.0
    %768 = vmatpush1.msra.mxu0 0.0
    %769 = vmatprep.mubr.f32.mxu0 0.0
    %v770 = vand.u32 %v525, 4294901760
    %v771 = vsub.f32 %v525, %v770
    %772 = vmatmul.mubr.f32.gmra.mrb[0].mxu0 %v771
    %v773 = vpop.f32.mrb[0].mxu0
    %v774 = vadd.f32 %v694, %v773
    %v775 = vpop.f32.mrb[0].mxu0
    %776 = vdwg.mxu0
    %777 = vmatprep.subr.mxu0 0.0
    %v778 = vand.u32 %v512, 4294901760
    %779 = vmatpush1.msra.mxu0 %v778
    %780 = vmatprep.subr.mxu0 0.0
    %v781 = vand.u32 %v513, 4294901760
    %782 = vmatpush1.msra.mxu0 %v781
    %783 = vmatprep.subr.mxu0 0.0
    %v784 = vand.u32 %v514, 4294901760
    %785 = vmatpush1.msra.mxu0 %v784
    %786 = vmatprep.subr.mxu0 0.0
    %v787 = vand.u32 %v515, 4294901760
    %788 = vmatpush1.msra.mxu0 %v787
    %789 = vmatprep.subr.mxu0 0.0
    %790 = vmatpush1.msra.mxu0 0.0
    %791 = vmatprep.subr.mxu0 0.0
    %792 = vmatpush1.msra.mxu0 0.0
    %793 = vmatprep.subr.mxu0 0.0
    %794 = vmatpush1.msra.mxu0 0.0
    %795 = vmatprep.subr.mxu0 0.0
    %796 = vmatpush1.msra.mxu0 0.0
    %797 = vmatprep.subr.mxu0 0.0
    %798 = vmatpush1.msra.mxu0 0.0
    %799 = vmatprep.subr.mxu0 0.0
    %800 = vmatpush1.msra.mxu0 0.0
    %801 = vmatprep.subr.mxu0 0.0
    %802 = vmatpush1.msra.mxu0 0.0
    %803 = vmatprep.subr.mxu0 0.0
    %804 = vmatpush1.msra.mxu0 0.0
    %805 = vmatprep.subr.mxu0 0.0
    %806 = vmatpush1.msra.mxu0 0.0
    %807 = vmatprep.subr.mxu0 0.0
    %808 = vmatpush1.msra.mxu0 0.0
    %809 = vmatprep.subr.mxu0 0.0
    %810 = vmatpush1.msra.mxu0 0.0
    %811 = vmatprep.subr.mxu0 0.0
    %812 = vmatpush1.msra.mxu0 0.0
    %813 = vmatprep.subr.mxu0 0.0
    %814 = vmatpush1.msra.mxu0 0.0
    %815 = vmatprep.subr.mxu0 0.0
    %816 = vmatpush1.msra.mxu0 0.0
    %817 = vmatprep.subr.mxu0 0.0
    %818 = vmatpush1.msra.mxu0 0.0
    %819 = vmatprep.subr.mxu0 0.0
    %820 = vmatpush1.msra.mxu0 0.0
    %821 = vmatprep.subr.mxu0 0.0
    %822 = vmatpush1.msra.mxu0 0.0
    %823 = vmatprep.subr.mxu0 0.0
    %824 = vmatpush1.msra.mxu0 0.0
    %825 = vmatprep.subr.mxu0 0.0
    %826 = vmatpush1.msra.mxu0 0.0
    %827 = vmatprep.subr.mxu0 0.0
    %828 = vmatpush1.msra.mxu0 0.0
    %829 = vmatprep.subr.mxu0 0.0
    %830 = vmatpush1.msra.mxu0 0.0
    %831 = vmatprep.subr.mxu0 0.0
    %832 = vmatpush1.msra.mxu0 0.0
    %833 = vmatprep.subr.mxu0 0.0
    %834 = vmatpush1.msra.mxu0 0.0
    %835 = vmatprep.subr.mxu0 0.0
    %836 = vmatpush1.msra.mxu0 0.0
    %837 = vmatprep.subr.mxu0 0.0
    %838 = vmatpush1.msra.mxu0 0.0
    %839 = vmatprep.subr.mxu0 0.0
    %840 = vmatpush1.msra.mxu0 0.0
    %841 = vmatprep.subr.mxu0 0.0
    %842 = vmatpush1.msra.mxu0 0.0
    %843 = vmatprep.subr.mxu0 0.0
    %844 = vmatpush1.msra.mxu0 0.0
    %845 = vmatprep.mubr.f32.mxu0 0.0
    %v846 = vand.u32 %v525, 4294901760
    %v847 = vsub.f32 %v525, %v846
    %v848 = vand.u32 %v847, 4294901760
    %849 = vmatmul.mubr.f32.gmra.mrb[0].mxu0 %v848
    %v850 = vpop.f32.mrb[0].mxu0
    %v851 = vadd.f32 %v774, %v850
    %v852 = vpop.f32.mrb[0].mxu0
    %853 = vdwg.mxu0
    %854 = vmatprep.subr.mxu0 0.0
    %v855 = vand.u32 %v512, 4294901760
    %v856 = vsub.f32 %v512, %v855
    %v857 = vand.u32 %v856, 4294901760
    %858 = vmatpush1.msra.mxu0 %v857
    %859 = vmatprep.subr.mxu0 0.0
    %v860 = vand.u32 %v513, 4294901760
    %v861 = vsub.f32 %v513, %v860
    %v862 = vand.u32 %v861, 4294901760
    %863 = vmatpush1.msra.mxu0 %v862
    %864 = vmatprep.subr.mxu0 0.0
    %v865 = vand.u32 %v514, 4294901760
    %v866 = vsub.f32 %v514, %v865
    %v867 = vand.u32 %v866, 4294901760
    %868 = vmatpush1.msra.mxu0 %v867
    %869 = vmatprep.subr.mxu0 0.0
    %v870 = vand.u32 %v515, 4294901760
    %v871 = vsub.f32 %v515, %v870
    %v872 = vand.u32 %v871, 4294901760
    %873 = vmatpush1.msra.mxu0 %v872
    %874 = vmatprep.subr.mxu0 0.0
    %875 = vmatpush1.msra.mxu0 0.0
    %876 = vmatprep.subr.mxu0 0.0
    %877 = vmatpush1.msra.mxu0 0.0
    %878 = vmatprep.subr.mxu0 0.0
    %879 = vmatpush1.msra.mxu0 0.0
    %880 = vmatprep.subr.mxu0 0.0
    %881 = vmatpush1.msra.mxu0 0.0
    %882 = vmatprep.subr.mxu0 0.0
    %883 = vmatpush1.msra.mxu0 0.0
    %884 = vmatprep.subr.mxu0 0.0
    %885 = vmatpush1.msra.mxu0 0.0
    %886 = vmatprep.subr.mxu0 0.0
    %887 = vmatpush1.msra.mxu0 0.0
    %888 = vmatprep.subr.mxu0 0.0
    %889 = vmatpush1.msra.mxu0 0.0
    %890 = vmatprep.subr.mxu0 0.0
    %891 = vmatpush1.msra.mxu0 0.0
    %892 = vmatprep.subr.mxu0 0.0
    %893 = vmatpush1.msra.mxu0 0.0
    %894 = vmatprep.subr.mxu0 0.0
    %895 = vmatpush1.msra.mxu0 0.0
    %896 = vmatprep.subr.mxu0 0.0
    %897 = vmatpush1.msra.mxu0 0.0
    %898 = vmatprep.subr.mxu0 0.0
    %899 = vmatpush1.msra.mxu0 0.0
    %900 = vmatprep.subr.mxu0 0.0
    %901 = vmatpush1.msra.mxu0 0.0
    %902 = vmatprep.subr.mxu0 0.0
    %903 = vmatpush1.msra.mxu0 0.0
    %904 = vmatprep.subr.mxu0 0.0
    %905 = vmatpush1.msra.mxu0 0.0
    %906 = vmatprep.subr.mxu0 0.0
    %907 = vmatpush1.msra.mxu0 0.0
    %908 = vmatprep.subr.mxu0 0.0
    %909 = vmatpush1.msra.mxu0 0.0
    %910 = vmatprep.subr.mxu0 0.0
    %911 = vmatpush1.msra.mxu0 0.0
    %912 = vmatprep.subr.mxu0 0.0
    %913 = vmatpush1.msra.mxu0 0.0
    %914 = vmatprep.subr.mxu0 0.0
    %915 = vmatpush1.msra.mxu0 0.0
    %916 = vmatprep.subr.mxu0 0.0
    %917 = vmatpush1.msra.mxu0 0.0
    %918 = vmatprep.subr.mxu0 0.0
    %919 = vmatpush1.msra.mxu0 0.0
    %920 = vmatprep.subr.mxu0 0.0
    %921 = vmatpush1.msra.mxu0 0.0
    %922 = vmatprep.subr.mxu0 0.0
    %923 = vmatpush1.msra.mxu0 0.0
    %924 = vmatprep.subr.mxu0 0.0
    %925 = vmatpush1.msra.mxu0 0.0
    %926 = vmatprep.subr.mxu0 0.0
    %927 = vmatpush1.msra.mxu0 0.0
    %928 = vmatprep.subr.mxu0 0.0
    %929 = vmatpush1.msra.mxu0 0.0
    %930 = vmatprep.mubr.f32.mxu0 0.0
    %v931 = vand.u32 %v525, 4294901760
    %932 = vmatmul.mubr.f32.gmra.mrb[0].mxu0 %v931
    %v933 = vpop.f32.mrb[0].mxu0
    %v934 = vadd.f32 %v851, %v933
    %v935 = vpop.f32.mrb[0].mxu0
    %936 = vdwg.mxu0
    %937 = vmatprep.subr.mxu0 0.0
    %v938 = vand.u32 %v512, 4294901760
    %939 = vmatpush1.msra.mxu0 %v938
    %940 = vmatprep.subr.mxu0 0.0
    %v941 = vand.u32 %v513, 4294901760
    %942 = vmatpush1.msra.mxu0 %v941
    %943 = vmatprep.subr.mxu0 0.0
    %v944 = vand.u32 %v514, 4294901760
    %945 = vmatpush1.msra.mxu0 %v944
    %946 = vmatprep.subr.mxu0 0.0
    %v947 = vand.u32 %v515, 4294901760
    %948 = vmatpush1.msra.mxu0 %v947
    %949 = vmatprep.subr.mxu0 0.0
    %950 = vmatpush1.msra.mxu0 0.0
    %951 = vmatprep.subr.mxu0 0.0
    %952 = vmatpush1.msra.mxu0 0.0
    %953 = vmatprep.subr.mxu0 0.0
    %954 = vmatpush1.msra.mxu0 0.0
    %955 = vmatprep.subr.mxu0 0.0
    %956 = vmatpush1.msra.mxu0 0.0
    %957 = vmatprep.subr.mxu0 0.0
    %958 = vmatpush1.msra.mxu0 0.0
    %959 = vmatprep.subr.mxu0 0.0
    %960 = vmatpush1.msra.mxu0 0.0
    %961 = vmatprep.subr.mxu0 0.0
    %962 = vmatpush1.msra.mxu0 0.0
    %963 = vmatprep.subr.mxu0 0.0
    %964 = vmatpush1.msra.mxu0 0.0
    %965 = vmatprep.subr.mxu0 0.0
    %966 = vmatpush1.msra.mxu0 0.0
    %967 = vmatprep.subr.mxu0 0.0
    %968 = vmatpush1.msra.mxu0 0.0
    %969 = vmatprep.subr.mxu0 0.0
    %970 = vmatpush1.msra.mxu0 0.0
    %971 = vmatprep.subr.mxu0 0.0
    %972 = vmatpush1.msra.mxu0 0.0
    %973 = vmatprep.subr.mxu0 0.0
    %974 = vmatpush1.msra.mxu0 0.0
    %975 = vmatprep.subr.mxu0 0.0
    %976 = vmatpush1.msra.mxu0 0.0
    %977 = vmatprep.subr.mxu0 0.0
    %978 = vmatpush1.msra.mxu0 0.0
    %979 = vmatprep.subr.mxu0 0.0
    %980 = vmatpush1.msra.mxu0 0.0
    %981 = vmatprep.subr.mxu0 0.0
    %982 = vmatpush1.msra.mxu0 0.0
    %983 = vmatprep.subr.mxu0 0.0
    %984 = vmatpush1.msra.mxu0 0.0
    %985 = vmatprep.subr.mxu0 0.0
    %986 = vmatpush1.msra.mxu0 0.0
    %987 = vmatprep.subr.mxu0 0.0
    %988 = vmatpush1.msra.mxu0 0.0
    %989 = vmatprep.subr.mxu0 0.0
    %990 = vmatpush1.msra.mxu0 0.0
    %991 = vmatprep.subr.mxu0 0.0
    %992 = vmatpush1.msra.mxu0 0.0
    %993 = vmatprep.subr.mxu0 0.0
    %994 = vmatpush1.msra.mxu0 0.0
    %995 = vmatprep.subr.mxu0 0.0
    %996 = vmatpush1.msra.mxu0 0.0
    %997 = vmatprep.subr.mxu0 0.0
    %998 = vmatpush1.msra.mxu0 0.0
    %999 = vmatprep.subr.mxu0 0.0
    %1000 = vmatpush1.msra.mxu0 0.0
    %1001 = vmatprep.subr.mxu0 0.0
    %1002 = vmatpush1.msra.mxu0 0.0
    %1003 = vmatprep.subr.mxu0 0.0
    %1004 = vmatpush1.msra.mxu0 0.0
    %1005 = vmatprep.mubr.f32.mxu0 0.0
    %v1006 = vand.u32 %v525, 4294901760
    %1007 = vmatmul.mubr.f32.gmra.mrb[0].mxu0 %v1006
    %v1008 = vpop.f32.mrb[0].mxu0
    %v1009 = vadd.f32 %v934, %v1008
    %v1010 = vpop.f32.mrb[0].mxu0
    %1011 = vdwg.mxu0
    %v1012 = vmax.f32 %v1009, 0.0
    %v1013 = vld [vmem:[%s5] sm:$0xff]
    %v1014 = vld [vmem:[%s5 + $0x8] sm:$0xff]
    %v1015 = vld [vmem:[%s5 + $0x10] sm:$0xff]
    %v1016 = vld [vmem:[%s5 + $0x18] sm:$0xff]
    %v1017 = vld [vmem:[%s6] sm:$0x1]
    %v1019 = vlaneseq
    %v1020 = vshrl.u32 %v1019, 7
    %v1021 = vsub.s32 0, %v1020
    %v1022 = vrot.slane %v1017, %v1021
    %v1025 = vsel %vm523, %v1012, 0
    %1027 = vmatprep.subr.mxu0 0.0
    %v1028 = vand.u32 %v1013, 4294901760
    %1029 = vmatpush1.msra.mxu0 %v1028
    %1030 = vmatprep.subr.mxu0 0.0
    %v1031 = vand.u32 %v1014, 4294901760
    %1032 = vmatpush1.msra.mxu0 %v1031
    %1033 = vmatprep.subr.mxu0 0.0
    %v1034 = vand.u32 %v1015, 4294901760
    %1035 = vmatpush1.msra.mxu0 %v1034
    %1036 = vmatprep.subr.mxu0 0.0
    %v1037 = vand.u32 %v1016, 4294901760
    %1038 = vmatpush1.msra.mxu0 %v1037
    %1039 = vmatprep.subr.mxu0 0.0
    %1040 = vmatpush1.msra.mxu0 0.0
    %1041 = vmatprep.subr.mxu0 0.0
    %1042 = vmatpush1.msra.mxu0 0.0
    %1043 = vmatprep.subr.mxu0 0.0
    %1044 = vmatpush1.msra.mxu0 0.0
    %1045 = vmatprep.subr.mxu0 0.0
    %1046 = vmatpush1.msra.mxu0 0.0
    %1047 = vmatprep.subr.mxu0 0.0
    %1048 = vmatpush1.msra.mxu0 0.0
    %1049 = vmatprep.subr.mxu0 0.0
    %1050 = vmatpush1.msra.mxu0 0.0
    %1051 = vmatprep.subr.mxu0 0.0
    %1052 = vmatpush1.msra.mxu0 0.0
    %1053 = vmatprep.subr.mxu0 0.0
    %1054 = vmatpush1.msra.mxu0 0.0
    %1055 = vmatprep.subr.mxu0 0.0
    %1056 = vmatpush1.msra.mxu0 0.0
    %1057 = vmatprep.subr.mxu0 0.0
    %1058 = vmatpush1.msra.mxu0 0.0
    %1059 = vmatprep.subr.mxu0 0.0
    %1060 = vmatpush1.msra.mxu0 0.0
    %1061 = vmatprep.subr.mxu0 0.0
    %1062 = vmatpush1.msra.mxu0 0.0
    %1063 = vmatprep.subr.mxu0 0.0
    %1064 = vmatpush1.msra.mxu0 0.0
    %1065 = vmatprep.subr.mxu0 0.0
    %1066 = vmatpush1.msra.mxu0 0.0
    %1067 = vmatprep.subr.mxu0 0.0
    %1068 = vmatpush1.msra.mxu0 0.0
    %1069 = vmatprep.subr.mxu0 0.0
    %1070 = vmatpush1.msra.mxu0 0.0
    %1071 = vmatprep.subr.mxu0 0.0
    %1072 = vmatpush1.msra.mxu0 0.0
    %1073 = vmatprep.subr.mxu0 0.0
    %1074 = vmatpush1.msra.mxu0 0.0
    %1075 = vmatprep.subr.mxu0 0.0
    %1076 = vmatpush1.msra.mxu0 0.0
    %1077 = vmatprep.subr.mxu0 0.0
    %1078 = vmatpush1.msra.mxu0 0.0
    %1079 = vmatprep.subr.mxu0 0.0
    %1080 = vmatpush1.msra.mxu0 0.0
    %1081 = vmatprep.subr.mxu0 0.0
    %1082 = vmatpush1.msra.mxu0 0.0
    %1083 = vmatprep.subr.mxu0 0.0
    %1084 = vmatpush1.msra.mxu0 0.0
    %1085 = vmatprep.subr.mxu0 0.0
    %1086 = vmatpush1.msra.mxu0 0.0
    %1087 = vmatprep.subr.mxu0 0.0
    %1088 = vmatpush1.msra.mxu0 0.0
    %1089 = vmatprep.subr.mxu0 0.0
    %1090 = vmatpush1.msra.mxu0 0.0
    %1091 = vmatprep.subr.mxu0 0.0
    %1092 = vmatpush1.msra.mxu0 0.0
    %1093 = vmatprep.subr.mxu0 0.0
    %1094 = vmatpush1.msra.mxu0 0.0
    %1095 = vmatprep.mubr.f32.mxu0 0.0
    %v1096 = vand.u32 %v1025, 4294901760
    %v1097 = vsub.f32 %v1025, %v1096
    %v1098 = vand.u32 %v1097, 4294901760
    %v1099 = vsub.f32 %v1097, %v1098
    %v1100 = vand.u32 %v1099, 4294901760
    %1101 = vmatmul.mubr.f32.gmra.mrb[0].mxu0 %v1100
    %v1102 = vpop.f32.mrb[0].mxu0
    %v1103 = vadd.f32 %v1022, %v1102
    %v1104 = vpop.f32.mrb[0].mxu0
    %1105 = vdwg.mxu0
    %1106 = vmatprep.subr.mxu0 0.0
    %v1107 = vand.u32 %v1013, 4294901760
    %v1108 = vsub.f32 %v1013, %v1107
    %v1109 = vand.u32 %v1108, 4294901760
    %v1110 = vsub.f32 %v1108, %v1109
    %v1111 = vand.u32 %v1110, 4294901760
    %1112 = vmatpush1.msra.mxu0 %v1111
    %1113 = vmatprep.subr.mxu0 0.0
    %v1114 = vand.u32 %v1014, 4294901760
    %v1115 = vsub.f32 %v1014, %v1114
    %v1116 = vand.u32 %v1115, 4294901760
    %v1117 = vsub.f32 %v1115, %v1116
    %v1118 = vand.u32 %v1117, 4294901760
    %1119 = vmatpush1.msra.mxu0 %v1118
    %1120 = vmatprep.subr.mxu0 0.0
    %v1121 = vand.u32 %v1015, 4294901760
    %v1122 = vsub.f32 %v1015, %v1121
    %v1123 = vand.u32 %v1122, 4294901760
    %v1124 = vsub.f32 %v1122, %v1123
    %v1125 = vand.u32 %v1124, 4294901760
    %1126 = vmatpush1.msra.mxu0 %v1125
    %1127 = vmatprep.subr.mxu0 0.0
    %v1128 = vand.u32 %v1016, 4294901760
    %v1129 = vsub.f32 %v1016, %v1128
    %v1130 = vand.u32 %v1129, 4294901760
    %v1131 = vsub.f32 %v1129, %v1130
    %v1132 = vand.u32 %v1131, 4294901760
    %1133 = vmatpush1.msra.mxu0 %v1132
    %1134 = vmatprep.subr.mxu0 0.0
    %1135 = vmatpush1.msra.mxu0 0.0
    %1136 = vmatprep.subr.mxu0 0.0
    %1137 = vmatpush1.msra.mxu0 0.0
    %1138 = vmatprep.subr.mxu0 0.0
    %1139 = vmatpush1.msra.mxu0 0.0
    %1140 = vmatprep.subr.mxu0 0.0
    %1141 = vmatpush1.msra.mxu0 0.0
    %1142 = vmatprep.subr.mxu0 0.0
    %1143 = vmatpush1.msra.mxu0 0.0
    %1144 = vmatprep.subr.mxu0 0.0
    %1145 = vmatpush1.msra.mxu0 0.0
    %1146 = vmatprep.subr.mxu0 0.0
    %1147 = vmatpush1.msra.mxu0 0.0
    %1148 = vmatprep.subr.mxu0 0.0
    %1149 = vmatpush1.msra.mxu0 0.0
    %1150 = vmatprep.subr.mxu0 0.0
    %1151 = vmatpush1.msra.mxu0 0.0
    %1152 = vmatprep.subr.mxu0 0.0
    %1153 = vmatpush1.msra.mxu0 0.0
    %1154 = vmatprep.subr.mxu0 0.0
    %1155 = vmatpush1.msra.mxu0 0.0
    %1156 = vmatprep.subr.mxu0 0.0
    %1157 = vmatpush1.msra.mxu0 0.0
    %1158 = vmatprep.subr.mxu0 0.0
    %1159 = vmatpush1.msra.mxu0 0.0
    %1160 = vmatprep.subr.mxu0 0.0
    %1161 = vmatpush1.msra.mxu0 0.0
    %1162 = vmatprep.subr.mxu0 0.0
    %1163 = vmatpush1.msra.mxu0 0.0
    %1164 = vmatprep.subr.mxu0 0.0
    %1165 = vmatpush1.msra.mxu0 0.0
    %1166 = vmatprep.subr.mxu0 0.0
    %1167 = vmatpush1.msra.mxu0 0.0
    %1168 = vmatprep.subr.mxu0 0.0
    %1169 = vmatpush1.msra.mxu0 0.0
    %1170 = vmatprep.subr.mxu0 0.0
    %1171 = vmatpush1.msra.mxu0 0.0
    %1172 = vmatprep.subr.mxu0 0.0
    %1173 = vmatpush1.msra.mxu0 0.0
    %1174 = vmatprep.subr.mxu0 0.0
    %1175 = vmatpush1.msra.mxu0 0.0
    %1176 = vmatprep.subr.mxu0 0.0
    %1177 = vmatpush1.msra.mxu0 0.0
    %1178 = vmatprep.subr.mxu0 0.0
    %1179 = vmatpush1.msra.mxu0 0.0
    %1180 = vmatprep.subr.mxu0 0.0
    %1181 = vmatpush1.msra.mxu0 0.0
    %1182 = vmatprep.subr.mxu0 0.0
    %1183 = vmatpush1.msra.mxu0 0.0
    %1184 = vmatprep.subr.mxu0 0.0
    %1185 = vmatpush1.msra.mxu0 0.0
    %1186 = vmatprep.subr.mxu0 0.0
    %1187 = vmatpush1.msra.mxu0 0.0
    %1188 = vmatprep.subr.mxu0 0.0
    %1189 = vmatpush1.msra.mxu0 0.0
    %1190 = vmatprep.mubr.f32.mxu0 0.0
    %v1191 = vand.u32 %v1025, 4294901760
    %1192 = vmatmul.mubr.f32.gmra.mrb[0].mxu0 %v1191
    %v1193 = vpop.f32.mrb[0].mxu0
    %v1194 = vadd.f32 %v1103, %v1193
    %v1195 = vpop.f32.mrb[0].mxu0
    %1196 = vdwg.mxu0
    %1197 = vmatprep.subr.mxu0 0.0
    %v1198 = vand.u32 %v1013, 4294901760
    %v1199 = vsub.f32 %v1013, %v1198
    %1200 = vmatpush1.msra.mxu0 %v1199
    %1201 = vmatprep.subr.mxu0 0.0
    %v1202 = vand.u32 %v1014, 4294901760
    %v1203 = vsub.f32 %v1014, %v1202
    %1204 = vmatpush1.msra.mxu0 %v1203
    %1205 = vmatprep.subr.mxu0 0.0
    %v1206 = vand.u32 %v1015, 4294901760
    %v1207 = vsub.f32 %v1015, %v1206
    %1208 = vmatpush1.msra.mxu0 %v1207
    %1209 = vmatprep.subr.mxu0 0.0
    %v1210 = vand.u32 %v1016, 4294901760
    %v1211 = vsub.f32 %v1016, %v1210
    %1212 = vmatpush1.msra.mxu0 %v1211
    %1213 = vmatprep.subr.mxu0 0.0
    %1214 = vmatpush1.msra.mxu0 0.0
    %1215 = vmatprep.subr.mxu0 0.0
    %1216 = vmatpush1.msra.mxu0 0.0
    %1217 = vmatprep.subr.mxu0 0.0
    %1218 = vmatpush1.msra.mxu0 0.0
    %1219 = vmatprep.subr.mxu0 0.0
    %1220 = vmatpush1.msra.mxu0 0.0
    %1221 = vmatprep.subr.mxu0 0.0
    %1222 = vmatpush1.msra.mxu0 0.0
    %1223 = vmatprep.subr.mxu0 0.0
    %1224 = vmatpush1.msra.mxu0 0.0
    %1225 = vmatprep.subr.mxu0 0.0
    %1226 = vmatpush1.msra.mxu0 0.0
    %1227 = vmatprep.subr.mxu0 0.0
    %1228 = vmatpush1.msra.mxu0 0.0
    %1229 = vmatprep.subr.mxu0 0.0
    %1230 = vmatpush1.msra.mxu0 0.0
    %1231 = vmatprep.subr.mxu0 0.0
    %1232 = vmatpush1.msra.mxu0 0.0
    %1233 = vmatprep.subr.mxu0 0.0
    %1234 = vmatpush1.msra.mxu0 0.0
    %1235 = vmatprep.subr.mxu0 0.0
    %1236 = vmatpush1.msra.mxu0 0.0
    %1237 = vmatprep.subr.mxu0 0.0
    %1238 = vmatpush1.msra.mxu0 0.0
    %1239 = vmatprep.subr.mxu0 0.0
    %1240 = vmatpush1.msra.mxu0 0.0
    %1241 = vmatprep.subr.mxu0 0.0
    %1242 = vmatpush1.msra.mxu0 0.0
    %1243 = vmatprep.subr.mxu0 0.0
    %1244 = vmatpush1.msra.mxu0 0.0
    %1245 = vmatprep.subr.mxu0 0.0
    %1246 = vmatpush1.msra.mxu0 0.0
    %1247 = vmatprep.subr.mxu0 0.0
    %1248 = vmatpush1.msra.mxu0 0.0
    %1249 = vmatprep.subr.mxu0 0.0
    %1250 = vmatpush1.msra.mxu0 0.0
    %1251 = vmatprep.subr.mxu0 0.0
    %1252 = vmatpush1.msra.mxu0 0.0
    %1253 = vmatprep.subr.mxu0 0.0
    %1254 = vmatpush1.msra.mxu0 0.0
    %1255 = vmatprep.subr.mxu0 0.0
    %1256 = vmatpush1.msra.mxu0 0.0
    %1257 = vmatprep.subr.mxu0 0.0
    %1258 = vmatpush1.msra.mxu0 0.0
    %1259 = vmatprep.subr.mxu0 0.0
    %1260 = vmatpush1.msra.mxu0 0.0
    %1261 = vmatprep.subr.mxu0 0.0
    %1262 = vmatpush1.msra.mxu0 0.0
    %1263 = vmatprep.subr.mxu0 0.0
    %1264 = vmatpush1.msra.mxu0 0.0
    %1265 = vmatprep.subr.mxu0 0.0
    %1266 = vmatpush1.msra.mxu0 0.0
    %1267 = vmatprep.subr.mxu0 0.0
    %1268 = vmatpush1.msra.mxu0 0.0
    %1269 = vmatprep.mubr.f32.mxu0 0.0
    %v1270 = vand.u32 %v1025, 4294901760
    %v1271 = vsub.f32 %v1025, %v1270
    %1272 = vmatmul.mubr.f32.gmra.mrb[0].mxu0 %v1271
    %v1273 = vpop.f32.mrb[0].mxu0
    %v1274 = vadd.f32 %v1194, %v1273
    %v1275 = vpop.f32.mrb[0].mxu0
    %1276 = vdwg.mxu0
    %1277 = vmatprep.subr.mxu0 0.0
    %v1278 = vand.u32 %v1013, 4294901760
    %1279 = vmatpush1.msra.mxu0 %v1278
    %1280 = vmatprep.subr.mxu0 0.0
    %v1281 = vand.u32 %v1014, 4294901760
    %1282 = vmatpush1.msra.mxu0 %v1281
    %1283 = vmatprep.subr.mxu0 0.0
    %v1284 = vand.u32 %v1015, 4294901760
    %1285 = vmatpush1.msra.mxu0 %v1284
    %1286 = vmatprep.subr.mxu0 0.0
    %v1287 = vand.u32 %v1016, 4294901760
    %1288 = vmatpush1.msra.mxu0 %v1287
    %1289 = vmatprep.subr.mxu0 0.0
    %1290 = vmatpush1.msra.mxu0 0.0
    %1291 = vmatprep.subr.mxu0 0.0
    %1292 = vmatpush1.msra.mxu0 0.0
    %1293 = vmatprep.subr.mxu0 0.0
    %1294 = vmatpush1.msra.mxu0 0.0
    %1295 = vmatprep.subr.mxu0 0.0
    %1296 = vmatpush1.msra.mxu0 0.0
    %1297 = vmatprep.subr.mxu0 0.0
    %1298 = vmatpush1.msra.mxu0 0.0
    %1299 = vmatprep.subr.mxu0 0.0
    %1300 = vmatpush1.msra.mxu0 0.0
    %1301 = vmatprep.subr.mxu0 0.0
    %1302 = vmatpush1.msra.mxu0 0.0
    %1303 = vmatprep.subr.mxu0 0.0
    %1304 = vmatpush1.msra.mxu0 0.0
    %1305 = vmatprep.subr.mxu0 0.0
    %1306 = vmatpush1.msra.mxu0 0.0
    %1307 = vmatprep.subr.mxu0 0.0
    %1308 = vmatpush1.msra.mxu0 0.0
    %1309 = vmatprep.subr.mxu0 0.0
    %1310 = vmatpush1.msra.mxu0 0.0
    %1311 = vmatprep.subr.mxu0 0.0
    %1312 = vmatpush1.msra.mxu0 0.0
    %1313 = vmatprep.subr.mxu0 0.0
    %1314 = vmatpush1.msra.mxu0 0.0
    %1315 = vmatprep.subr.mxu0 0.0
    %1316 = vmatpush1.msra.mxu0 0.0
    %1317 = vmatprep.subr.mxu0 0.0
    %1318 = vmatpush1.msra.mxu0 0.0
    %1319 = vmatprep.subr.mxu0 0.0
    %1320 = vmatpush1.msra.mxu0 0.0
    %1321 = vmatprep.subr.mxu0 0.0
    %1322 = vmatpush1.msra.mxu0 0.0
    %1323 = vmatprep.subr.mxu0 0.0
    %1324 = vmatpush1.msra.mxu0 0.0
    %1325 = vmatprep.subr.mxu0 0.0
    %1326 = vmatpush1.msra.mxu0 0.0
    %1327 = vmatprep.subr.mxu0 0.0
    %1328 = vmatpush1.msra.mxu0 0.0
    %1329 = vmatprep.subr.mxu0 0.0
    %1330 = vmatpush1.msra.mxu0 0.0
    %1331 = vmatprep.subr.mxu0 0.0
    %1332 = vmatpush1.msra.mxu0 0.0
    %1333 = vmatprep.subr.mxu0 0.0
    %1334 = vmatpush1.msra.mxu0 0.0
    %1335 = vmatprep.subr.mxu0 0.0
    %1336 = vmatpush1.msra.mxu0 0.0
    %1337 = vmatprep.subr.mxu0 0.0
    %1338 = vmatpush1.msra.mxu0 0.0
    %1339 = vmatprep.subr.mxu0 0.0
    %1340 = vmatpush1.msra.mxu0 0.0
    %1341 = vmatprep.subr.mxu0 0.0
    %1342 = vmatpush1.msra.mxu0 0.0
    %1343 = vmatprep.subr.mxu0 0.0
    %1344 = vmatpush1.msra.mxu0 0.0
    %1345 = vmatprep.mubr.f32.mxu0 0.0
    %v1346 = vand.u32 %v1025, 4294901760
    %v1347 = vsub.f32 %v1025, %v1346
    %v1348 = vand.u32 %v1347, 4294901760
    %1349 = vmatmul.mubr.f32.gmra.mrb[0].mxu0 %v1348
    %v1350 = vpop.f32.mrb[0].mxu0
    %v1351 = vadd.f32 %v1274, %v1350
    %v1352 = vpop.f32.mrb[0].mxu0
    %1353 = vdwg.mxu0
    %1354 = vmatprep.subr.mxu0 0.0
    %v1355 = vand.u32 %v1013, 4294901760
    %v1356 = vsub.f32 %v1013, %v1355
    %v1357 = vand.u32 %v1356, 4294901760
    %1358 = vmatpush1.msra.mxu0 %v1357
    %1359 = vmatprep.subr.mxu0 0.0
    %v1360 = vand.u32 %v1014, 4294901760
    %v1361 = vsub.f32 %v1014, %v1360
    %v1362 = vand.u32 %v1361, 4294901760
    %1363 = vmatpush1.msra.mxu0 %v1362
    %1364 = vmatprep.subr.mxu0 0.0
    %v1365 = vand.u32 %v1015, 4294901760
    %v1366 = vsub.f32 %v1015, %v1365
    %v1367 = vand.u32 %v1366, 4294901760
    %1368 = vmatpush1.msra.mxu0 %v1367
    %1369 = vmatprep.subr.mxu0 0.0
    %v1370 = vand.u32 %v1016, 4294901760
    %v1371 = vsub.f32 %v1016, %v1370
    %v1372 = vand.u32 %v1371, 4294901760
    %1373 = vmatpush1.msra.mxu0 %v1372
    %1374 = vmatprep.subr.mxu0 0.0
    %1375 = vmatpush1.msra.mxu0 0.0
    %1376 = vmatprep.subr.mxu0 0.0
    %1377 = vmatpush1.msra.mxu0 0.0
    %1378 = vmatprep.subr.mxu0 0.0
    %1379 = vmatpush1.msra.mxu0 0.0
    %1380 = vmatprep.subr.mxu0 0.0
    %1381 = vmatpush1.msra.mxu0 0.0
    %1382 = vmatprep.subr.mxu0 0.0
    %1383 = vmatpush1.msra.mxu0 0.0
    %1384 = vmatprep.subr.mxu0 0.0
    %1385 = vmatpush1.msra.mxu0 0.0
    %1386 = vmatprep.subr.mxu0 0.0
    %1387 = vmatpush1.msra.mxu0 0.0
    %1388 = vmatprep.subr.mxu0 0.0
    %1389 = vmatpush1.msra.mxu0 0.0
    %1390 = vmatprep.subr.mxu0 0.0
    %1391 = vmatpush1.msra.mxu0 0.0
    %1392 = vmatprep.subr.mxu0 0.0
    %1393 = vmatpush1.msra.mxu0 0.0
    %1394 = vmatprep.subr.mxu0 0.0
    %1395 = vmatpush1.msra.mxu0 0.0
    %1396 = vmatprep.subr.mxu0 0.0
    %1397 = vmatpush1.msra.mxu0 0.0
    %1398 = vmatprep.subr.mxu0 0.0
    %1399 = vmatpush1.msra.mxu0 0.0
    %1400 = vmatprep.subr.mxu0 0.0
    %1401 = vmatpush1.msra.mxu0 0.0
    %1402 = vmatprep.subr.mxu0 0.0
    %1403 = vmatpush1.msra.mxu0 0.0
    %1404 = vmatprep.subr.mxu0 0.0
    %1405 = vmatpush1.msra.mxu0 0.0
    %1406 = vmatprep.subr.mxu0 0.0
    %1407 = vmatpush1.msra.mxu0 0.0
    %1408 = vmatprep.subr.mxu0 0.0
    %1409 = vmatpush1.msra.mxu0 0.0
    %1410 = vmatprep.subr.mxu0 0.0
    %1411 = vmatpush1.msra.mxu0 0.0
    %1412 = vmatprep.subr.mxu0 0.0
    %1413 = vmatpush1.msra.mxu0 0.0
    %1414 = vmatprep.subr.mxu0 0.0
    %1415 = vmatpush1.msra.mxu0 0.0
    %1416 = vmatprep.subr.mxu0 0.0
    %1417 = vmatpush1.msra.mxu0 0.0
    %1418 = vmatprep.subr.mxu0 0.0
    %1419 = vmatpush1.msra.mxu0 0.0
    %1420 = vmatprep.subr.mxu0 0.0
    %1421 = vmatpush1.msra.mxu0 0.0
    %1422 = vmatprep.subr.mxu0 0.0
    %1423 = vmatpush1.msra.mxu0 0.0
    %1424 = vmatprep.subr.mxu0 0.0
    %1425 = vmatpush1.msra.mxu0 0.0
    %1426 = vmatprep.subr.mxu0 0.0
    %1427 = vmatpush1.msra.mxu0 0.0
    %1428 = vmatprep.subr.mxu0 0.0
    %1429 = vmatpush1.msra.mxu0 0.0
    %1430 = vmatprep.mubr.f32.mxu0 0.0
    %v1431 = vand.u32 %v1025, 4294901760
    %1432 = vmatmul.mubr.f32.gmra.mrb[0].mxu0 %v1431
    %v1433 = vpop.f32.mrb[0].mxu0
    %v1434 = vadd.f32 %v1351, %v1433
    %v1435 = vpop.f32.mrb[0].mxu0
    %1436 = vdwg.mxu0
    %1437 = vmatprep.subr.mxu0 0.0
    %v1438 = vand.u32 %v1013, 4294901760
    %1439 = vmatpush1.msra.mxu0 %v1438
    %1440 = vmatprep.subr.mxu0 0.0
    %v1441 = vand.u32 %v1014, 4294901760
    %1442 = vmatpush1.msra.mxu0 %v1441
    %1443 = vmatprep.subr.mxu0 0.0
    %v1444 = vand.u32 %v1015, 4294901760
    %1445 = vmatpush1.msra.mxu0 %v1444
    %1446 = vmatprep.subr.mxu0 0.0
    %v1447 = vand.u32 %v1016, 4294901760
    %1448 = vmatpush1.msra.mxu0 %v1447
    %1449 = vmatprep.subr.mxu0 0.0
    %1450 = vmatpush1.msra.mxu0 0.0
    %1451 = vmatprep.subr.mxu0 0.0
    %1452 = vmatpush1.msra.mxu0 0.0
    %1453 = vmatprep.subr.mxu0 0.0
    %1454 = vmatpush1.msra.mxu0 0.0
    %1455 = vmatprep.subr.mxu0 0.0
    %1456 = vmatpush1.msra.mxu0 0.0
    %1457 = vmatprep.subr.mxu0 0.0
    %1458 = vmatpush1.msra.mxu0 0.0
    %1459 = vmatprep.subr.mxu0 0.0
    %1460 = vmatpush1.msra.mxu0 0.0
    %1461 = vmatprep.subr.mxu0 0.0
    %1462 = vmatpush1.msra.mxu0 0.0
    %1463 = vmatprep.subr.mxu0 0.0
    %1464 = vmatpush1.msra.mxu0 0.0
    %1465 = vmatprep.subr.mxu0 0.0
    %1466 = vmatpush1.msra.mxu0 0.0
    %1467 = vmatprep.subr.mxu0 0.0
    %1468 = vmatpush1.msra.mxu0 0.0
    %1469 = vmatprep.subr.mxu0 0.0
    %1470 = vmatpush1.msra.mxu0 0.0
    %1471 = vmatprep.subr.mxu0 0.0
    %1472 = vmatpush1.msra.mxu0 0.0
    %1473 = vmatprep.subr.mxu0 0.0
    %1474 = vmatpush1.msra.mxu0 0.0
    %1475 = vmatprep.subr.mxu0 0.0
    %1476 = vmatpush1.msra.mxu0 0.0
    %1477 = vmatprep.subr.mxu0 0.0
    %1478 = vmatpush1.msra.mxu0 0.0
    %1479 = vmatprep.subr.mxu0 0.0
    %1480 = vmatpush1.msra.mxu0 0.0
    %1481 = vmatprep.subr.mxu0 0.0
    %1482 = vmatpush1.msra.mxu0 0.0
    %1483 = vmatprep.subr.mxu0 0.0
    %1484 = vmatpush1.msra.mxu0 0.0
    %1485 = vmatprep.subr.mxu0 0.0
    %1486 = vmatpush1.msra.mxu0 0.0
    %1487 = vmatprep.subr.mxu0 0.0
    %1488 = vmatpush1.msra.mxu0 0.0
    %1489 = vmatprep.subr.mxu0 0.0
    %1490 = vmatpush1.msra.mxu0 0.0
    %1491 = vmatprep.subr.mxu0 0.0
    %1492 = vmatpush1.msra.mxu0 0.0
    %1493 = vmatprep.subr.mxu0 0.0
    %1494 = vmatpush1.msra.mxu0 0.0
    %1495 = vmatprep.subr.mxu0 0.0
    %1496 = vmatpush1.msra.mxu0 0.0
    %1497 = vmatprep.subr.mxu0 0.0
    %1498 = vmatpush1.msra.mxu0 0.0
    %1499 = vmatprep.subr.mxu0 0.0
    %1500 = vmatpush1.msra.mxu0 0.0
    %1501 = vmatprep.subr.mxu0 0.0
    %1502 = vmatpush1.msra.mxu0 0.0
    %1503 = vmatprep.subr.mxu0 0.0
    %1504 = vmatpush1.msra.mxu0 0.0
    %1505 = vmatprep.mubr.f32.mxu0 0.0
    %v1506 = vand.u32 %v1025, 4294901760
    %1507 = vmatmul.mubr.f32.gmra.mrb[0].mxu0 %v1506
    %v1508 = vpop.f32.mrb[0].mxu0
    %v1509 = vadd.f32 %v1434, %v1508
    %v1510 = vpop.f32.mrb[0].mxu0
    %1511 = vdwg.mxu0
    %vm1512 = vcmask 31744
    %1513 = vst.msk [vmem:[%s7] sm:$0xff] %vm1512, %v1509
    // Predicated region
    $region34: #{qnetwork_forward.1} parent=1 // pred_check
      _
    $region35: #{qnetwork_forward.1} parent=1 // pred_check_branch
      %1515 = sbr.rel (0) target = $region37
    $region36: #{qnetwork_forward.1} parent=1 // pred_region
      _
    $region37: #{qnetwork_forward.1} parent=1 // pred_fallthru
      _
    // Predicated region
    $region38: #{qnetwork_forward.1} parent=1 // pred_check
      _
    $region39: #{qnetwork_forward.1} parent=1 // pred_check_branch
      %1517 = sbr.rel (0) target = $region41
    $region40: #{qnetwork_forward.1} parent=1 // pred_region
      _
    $region41: #{qnetwork_forward.1} parent=1 // pred_fallthru
      _
    %1518 = vsyncpa [#allocation3], 1

</llo_original>
